<compile_context>
chip_gen: v5e
topology: v5e:2x2
jax: 0.10.0
libtpu: 0.0.40
codegen_flags: <defaults>
</compile_context>

<pallas_src>
import functools

import jax
import jax.numpy as jnp
from jax.experimental import pallas as pl
from jax.experimental.pallas import tpu as pltpu


def _stnkd_kernel(x_ref, w1_ref, b1_ref, w2_ref, b2_ref, w3_ref, b3_ref,
                  wf1_ref, bf1_ref, wf2_ref, bf2_ref, wf3_ref, bf3_ref,
                  out_ref, gmax_ref, *, n_valid, mask_points):
    """Grid = (batch_tiles, point_tiles).

    x_ref: (TB, TN, k); out_ref: (1, TB, k*k); gmax_ref: (TB, C3) VMEM scratch.
    """
    ni = pl.program_id(1)
    TB, TN, K = x_ref.shape
    cdt = wf1_ref.dtype            # MXU operand dtype (bf16 default, f32 debug)
    c3 = w3_ref.shape[1]           # conv3 output width

    # ---- conv stage: one (TB*TN, C) matmul chain (BN scale pre-folded into W).
    # Bias add + ReLU stay f32; the single .astype(cdt) right after the ReLU is
    # the only copy kept live for the next dot.
    x = x_ref[...].reshape(TB * TN, K)
    h = jnp.maximum(
        jnp.dot(x, w1_ref[...], preferred_element_type=jnp.float32) + b1_ref[...],
        0.0).astype(cdt)
    h = jnp.maximum(
        jnp.dot(h, w2_ref[...], preferred_element_type=jnp.float32) + b2_ref[...],
        0.0).astype(cdt)
    h = jnp.maximum(
        jnp.dot(h, w3_ref[...], preferred_element_type=jnp.float32) + b3_ref[...],
        0.0)                       # f32: feeds the max-pool, not another dot

    # ---- online max-pool over the point axis into persistent VMEM scratch.
    h = h.reshape(TB, TN, c3)
    if mask_points:
        # Padded points must not contribute: relu(fused_bias) rows could exceed
        # the true per-batch max, so force them to -inf before the reduction.
        pt = ni * TN + jax.lax.broadcasted_iota(jnp.int32, (1, TN, 1), 1)
        h = jnp.where(pt < n_valid, h, -jnp.inf)
    tile_max = jnp.max(h, axis=1)  # (TB, C3), f32

    @pl.when(ni == 0)
    def _():
        gmax_ref[...] = tile_max

    @pl.when(ni != 0)
    def _():
        gmax_ref[...] = jnp.maximum(gmax_ref[...], tile_max)

    # ---- FC head: once per batch tile, on the pooled (TB, C3) block.
    @pl.when(ni == pl.num_programs(1) - 1)
    def _():
        g = gmax_ref[...].astype(cdt)
        f = jnp.maximum(
            jnp.dot(g, wf1_ref[...], preferred_element_type=jnp.float32)
            + bf1_ref[...], 0.0).astype(cdt)
        f = jnp.maximum(
            jnp.dot(f, wf2_ref[...], preferred_element_type=jnp.float32)
            + bf2_ref[...], 0.0).astype(cdt)
        # fc3 bias already contains the flattened identity matrix.
        f = (jnp.dot(f, wf3_ref[...], preferred_element_type=jnp.float32)
             + bf3_ref[...])
        out_ref[...] = f.reshape(out_ref.shape).astype(out_ref.dtype)


def _prepare_params(params, k, compute_dtype):
    """Fold eval-mode BN into weights/biases; fold identity into fc3 bias.

    Returns (weights[6] in compute_dtype, biases[6] as (1, C) float32).
    """
    eps = 1e-5
    ws, bs = [], []
    for i in range(1, 6):
        scale = params[f"bn{i}_gamma"] / jnp.sqrt(params[f"bn{i}_var"] + eps)
        w_eff = params[f"w{i}"] * scale[None, :]
        b_eff = params[f"bn{i}_beta"] + (params[f"b{i}"] - params[f"bn{i}_mean"]) * scale
        ws.append(w_eff.astype(compute_dtype))
        bs.append(b_eff.reshape(1, -1).astype(jnp.float32))
    # fc3: bias + flattened identity (constant folded on host).
    ws.append(params["w6"].astype(compute_dtype))
    b_eff = params["b6"] + jnp.eye(k, dtype=jnp.float32).reshape(-1)
    bs.append(b_eff.reshape(1, -1).astype(jnp.float32))
    return ws, bs


def _tpu_tuning():
    """Per-generation (row_cap, vmem_limit_bytes) for the conv-stage tile."""
    kind = ""
    try:
        kind = jax.devices()[0].device_kind.lower()
    except Exception:
        pass
    if "v6" in kind:                      # v6e: 128 MiB physical VMEM
        return 8192, 96 * 1024 * 1024
    if "v7" in kind or "7x" in kind:      # v7x: 64 MiB physical VMEM
        return 4096, 48 * 1024 * 1024
    if "v5" in kind:                      # v5e: 128 MiB physical, 16 MiB default scoped
        return 4096, 64 * 1024 * 1024
    return 4096, 48 * 1024 * 1024         # unknown: conservative


def _choose_tiles(B, n_pad, row_cap):
    """Pick (batch_tile, point_tile).

    Targets: TB*TN as large as the per-generation row cap allows (amortize the
    ~0.35us/step grid overhead and fill the 256-wide MXU M dim), while keeping
    the batch grid extent >= 2 whenever B >= 2 so both v7x TensorCores get work.
    """
    tn = 128                              # n_pad is always a multiple of 128
    for cand in (512, 256):
        if n_pad % cand == 0 and cand <= row_cap:
            tn = cand
            break
    tb_limit = B // 2 if B >= 2 else 1    # keep >= 2 batch tiles when possible
    tb = 1
    for cand in (16, 8, 4, 2):
        if B % cand == 0 and cand <= tb_limit and cand * tn <= row_cap:
            tb = cand
            break
    return tb, tn


def stnkd_forward(x_ncw, params, k, compute_dtype=jnp.bfloat16):
    """x_ncw: (B, k, N) float32 (PyTorch layout).  Returns (B, k, k) float32."""
    B, K, N = x_ncw.shape
    assert K == k
    ws, bs = _prepare_params(params, k, compute_dtype)
    c3 = ws[2].shape[1]                   # conv3 output width

    # (B, N, k): channels on the lane axis so the 1x1 convs are plain matmuls.
    # TODO(synk): the k-wide input lane axis is lane-sparse (padded to 128
    # lanes); the per-generation row caps above already budget for that waste.
    x = jnp.transpose(x_ncw, (0, 2, 1))
    n_pad = ((N + 127) // 128) * 128      # point axis padded to a multiple of 128
    if n_pad != N:
        x = jnp.pad(x, ((0, 0), (0, n_pad - N), (0, 0)))
    x = x.astype(compute_dtype)

    row_cap, vmem_limit = _tpu_tuning()
    TB, TN = _choose_tiles(B, n_pad, row_cap)
    grid = (B // TB, n_pad // TN)

    def const_spec(arr):
        # Grid-invariant whole-array block; single-buffered (its block index
        # never changes, double-buffering would only double VMEM residency).
        shape = arr.shape
        return pl.BlockSpec(shape, lambda bi, ni: (0,) * len(shape),
                            pipeline_mode=pl.Buffered(1))

    in_specs = [pl.BlockSpec((TB, TN, K), lambda bi, ni: (bi, ni, 0))]
    operands = [x]
    for w, b in zip(ws, bs):
        in_specs += [const_spec(w), const_spec(b)]
        operands += [w, b]

    kernel = functools.partial(_stnkd_kernel, n_valid=N, mask_points=(n_pad != N))

    out_blocks = pl.pallas_call(
        kernel,
        out_shape=jax.ShapeDtypeStruct((B // TB, TB, k * k), jnp.float32),
        grid=grid,
        in_specs=in_specs,
        out_specs=pl.BlockSpec((1, TB, k * k), lambda bi, ni: (bi, 0, 0)),
        scratch_shapes=[pltpu.VMEM((TB, c3), jnp.float32)],
        compiler_params=pltpu.CompilerParams(
            dimension_semantics=("parallel", "arbitrary"),
            vmem_limit_bytes=vmem_limit),
    )(*operands)

    return out_blocks.reshape(B, k, k)


def _reference_forward(x_ncw, params, k, compute_dtype=jnp.bfloat16):
    """Pure-JAX reference mirroring the kernel's math (BN/identity folded)."""
    ws, bs = _prepare_params(params, k, compute_dtype)
    B, K, N = x_ncw.shape
    a = jnp.transpose(x_ncw, (0, 2, 1)).reshape(B * N, K).astype(compute_dtype)
    h = jnp.maximum(jnp.dot(a, ws[0], preferred_element_type=jnp.float32)
                    + bs[0], 0.0).astype(compute_dtype)
    h = jnp.maximum(jnp.dot(h, ws[1], preferred_element_type=jnp.float32)
                    + bs[1], 0.0).astype(compute_dtype)
    h = jnp.maximum(jnp.dot(h, ws[2], preferred_element_type=jnp.float32)
                    + bs[2], 0.0)
    g = jnp.max(h.reshape(B, N, -1), axis=1)  # (B, 512), f32
    f = jnp.maximum(jnp.dot(g.astype(compute_dtype), ws[3],
                            preferred_element_type=jnp.float32)
                    + bs[3], 0.0).astype(compute_dtype)
    f = jnp.maximum(jnp.dot(f, ws[4], preferred_element_type=jnp.float32)
                    + bs[4], 0.0).astype(compute_dtype)
    f = jnp.dot(f, ws[5], preferred_element_type=jnp.float32) + bs[5]
    return f.reshape(B, k, k)


def init_params(key, k):
    """Deterministic synthetic parameters (PyTorch shapes, stored pre-transposed)."""
    dims_conv = [(k, 64), (64, 128), (128, 512)]
    dims_fc = [(512, 256), (256, 128), (128, k * k)]
    params = {}
    keys = jax.random.split(key, 32)
    ki = 0

    def nxt():
        nonlocal ki
        kk_ = keys[ki]
        ki += 1
        return kk_

    for i, (cin, cout) in enumerate(dims_conv + dims_fc, start=1):
        w = jax.random.normal(nxt(), (cin, cout), jnp.float32) * (1.0 / jnp.sqrt(cin))
        b = jax.random.normal(nxt(), (cout,), jnp.float32) * 0.05
        params[f"w{i}"] = w
        params[f"b{i}"] = b

    bn_sizes = [64, 128, 512, 256, 128]
    for i, c in enumerate(bn_sizes, start=1):
        params[f"bn{i}_gamma"] = 1.0 + 0.1 * jax.random.normal(nxt(), (c,), jnp.float32)
        params[f"bn{i}_beta"] = 0.05 * jax.random.normal(nxt(), (c,), jnp.float32)
        params[f"bn{i}_mean"] = 0.05 * jax.random.normal(nxt(), (c,), jnp.float32)
        params[f"bn{i}_var"] = jnp.abs(1.0 + 0.1 * jax.random.normal(nxt(), (c,), jnp.float32))
    return params


if __name__ == "__main__":
    B, K, N = 2, 16, 64  # (batch, k, num_points) -- PyTorch input is (B, k, N)
    key = jax.random.PRNGKey(0)
    xkey, pkey = jax.random.split(key)
    x = jax.random.normal(xkey, (B, K, N), jnp.float32)
    params = init_params(pkey, K)

    # Default path: bf16 MXU compute, f32 accumulation/epilogue (mirrored ref).
    out = jax.block_until_ready(stnkd_forward(x, params, K))
    ref = _reference_forward(x, params, K, compute_dtype=jnp.bfloat16)
    assert out.shape == (B, K, K), out.shape
    assert jnp.allclose(out, ref, atol=2e-3, rtol=2e-3), "bf16 mismatch vs reference"

    # f32 debug path, tighter check against the mirrored reference.
    out_f32 = jax.block_until_ready(
        stnkd_forward(x, params, K, compute_dtype=jnp.float32))
    ref_f32 = _reference_forward(x, params, K, compute_dtype=jnp.float32)
    assert jnp.allclose(out_f32, ref_f32, atol=1e-4, rtol=1e-4), "f32 mismatch vs reference"

    print("KERNEL_OK")
</pallas_src>

<mosaic_0001>
module attributes {stable_mosaic.version = 11 : i64} {
  func.func @_stnkd_kernel(%arg0: i32, %arg1: i32, %arg2: memref<1x128x16xbf16, #tpu.memory_space<vmem>>, %arg3: memref<16x64xbf16, #tpu.memory_space<vmem>>, %arg4: memref<1x64xf32, #tpu.memory_space<vmem>>, %arg5: memref<64x128xbf16, #tpu.memory_space<vmem>>, %arg6: memref<1x128xf32, #tpu.memory_space<vmem>>, %arg7: memref<128x512xbf16, #tpu.memory_space<vmem>>, %arg8: memref<1x512xf32, #tpu.memory_space<vmem>>, %arg9: memref<512x256xbf16, #tpu.memory_space<vmem>>, %arg10: memref<1x256xf32, #tpu.memory_space<vmem>>, %arg11: memref<256x128xbf16, #tpu.memory_space<vmem>>, %arg12: memref<1x128xf32, #tpu.memory_space<vmem>>, %arg13: memref<128x256xbf16, #tpu.memory_space<vmem>>, %arg14: memref<1x256xf32, #tpu.memory_space<vmem>>, %arg15: memref<1x1x256xf32, #tpu.memory_space<vmem>>, %arg16: memref<1x512xf32, #tpu.memory_space<vmem>>) attributes {dimension_semantics = [#tpu.dimension_semantics<parallel>, #tpu.dimension_semantics<arbitrary>], iteration_bounds = array<i64: 2, 1>, scalar_prefetch = 0 : i64, scratch_operands = 1 : i64, tpu.core_type = #tpu.core_type<tc>, window_params = [{transform_indices = @transform_0, window_bounds = array<i64: 1, 128, 16>}, {pipeline_mode = #tpu.pipeline_mode<synchronous>, transform_indices = @transform_1, window_bounds = array<i64: 16, 64>}, {pipeline_mode = #tpu.pipeline_mode<synchronous>, transform_indices = @transform_2, window_bounds = array<i64: 1, 64>}, {pipeline_mode = #tpu.pipeline_mode<synchronous>, transform_indices = @transform_3, window_bounds = array<i64: 64, 128>}, {pipeline_mode = #tpu.pipeline_mode<synchronous>, transform_indices = @transform_4, window_bounds = array<i64: 1, 128>}, {pipeline_mode = #tpu.pipeline_mode<synchronous>, transform_indices = @transform_5, window_bounds = array<i64: 128, 512>}, {pipeline_mode = #tpu.pipeline_mode<synchronous>, transform_indices = @transform_6, window_bounds = array<i64: 1, 512>}, {pipeline_mode = #tpu.pipeline_mode<synchronous>, transform_indices = @transform_7, window_bounds = array<i64: 512, 256>}, {pipeline_mode = #tpu.pipeline_mode<synchronous>, transform_indices = @transform_8, window_bounds = array<i64: 1, 256>}, {pipeline_mode = #tpu.pipeline_mode<synchronous>, transform_indices = @transform_9, window_bounds = array<i64: 256, 128>}, {pipeline_mode = #tpu.pipeline_mode<synchronous>, transform_indices = @transform_10, window_bounds = array<i64: 1, 128>}, {pipeline_mode = #tpu.pipeline_mode<synchronous>, transform_indices = @transform_11, window_bounds = array<i64: 128, 256>}, {pipeline_mode = #tpu.pipeline_mode<synchronous>, transform_indices = @transform_12, window_bounds = array<i64: 1, 256>}, {transform_indices = @transform_13, window_bounds = array<i64: 1, 1, 256>}]} {
    %c0 = arith.constant 0 : index
    %c0_0 = arith.constant 0 : index
    %c0_1 = arith.constant 0 : index
    %0 = vector.load %arg2[%c0, %c0_0, %c0_1] : memref<1x128x16xbf16, #tpu.memory_space<vmem>>, vector<1x128x16xbf16>
    %1 = vector.shape_cast %0 : vector<1x128x16xbf16> to vector<128x16xbf16>
    %c0_2 = arith.constant 0 : index
    %c0_3 = arith.constant 0 : index
    %2 = vector.load %arg3[%c0_2, %c0_3] : memref<16x64xbf16, #tpu.memory_space<vmem>>, vector<16x64xbf16>
    %cst = arith.constant dense<0.000000e+00> : vector<128x64xf32>
    %3 = tpu.matmul %1, %2, %cst {dimension_numbers = #tpu.dot_dimension_numbers<[1], [0], [0], [1], [0, 0, 1, 1], [], []>} : vector<128x16xbf16>, vector<16x64xbf16>, vector<128x64xf32> -> vector<128x64xf32>
    %c0_4 = arith.constant 0 : index
    %c0_5 = arith.constant 0 : index
    %4 = vector.load %arg4[%c0_4, %c0_5] : memref<1x64xf32, #tpu.memory_space<vmem>>, vector<1x64xf32>
    %5 = vector.broadcast %4 : vector<1x64xf32> to vector<128x64xf32>
    %6 = arith.addf %3, %5 : vector<128x64xf32>
    %cst_6 = arith.constant 0.000000e+00 : f32
    %7 = vector.broadcast %cst_6 : f32 to vector<128x64xf32>
    %8 = arith.maximumf %6, %7 : vector<128x64xf32>
    %9 = arith.truncf %8 : vector<128x64xf32> to vector<128x64xbf16>
    %c0_7 = arith.constant 0 : index
    %c0_8 = arith.constant 0 : index
    %10 = vector.load %arg5[%c0_7, %c0_8] : memref<64x128xbf16, #tpu.memory_space<vmem>>, vector<64x128xbf16>
    %cst_9 = arith.constant dense<0.000000e+00> : vector<128x128xf32>
    %11 = tpu.matmul %9, %10, %cst_9 {dimension_numbers = #tpu.dot_dimension_numbers<[1], [0], [0], [1], [0, 0, 1, 1], [], []>} : vector<128x64xbf16>, vector<64x128xbf16>, vector<128x128xf32> -> vector<128x128xf32>
    %c0_10 = arith.constant 0 : index
    %c0_11 = arith.constant 0 : index
    %12 = vector.load %arg6[%c0_10, %c0_11] : memref<1x128xf32, #tpu.memory_space<vmem>>, vector<1x128xf32>
    %13 = vector.broadcast %12 : vector<1x128xf32> to vector<128x128xf32>
    %14 = arith.addf %11, %13 : vector<128x128xf32>
    %cst_12 = arith.constant 0.000000e+00 : f32
    %15 = vector.broadcast %cst_12 : f32 to vector<128x128xf32>
    %16 = arith.maximumf %14, %15 : vector<128x128xf32>
    %17 = arith.truncf %16 : vector<128x128xf32> to vector<128x128xbf16>
    %c0_13 = arith.constant 0 : index
    %c0_14 = arith.constant 0 : index
    %18 = vector.load %arg7[%c0_13, %c0_14] : memref<128x512xbf16, #tpu.memory_space<vmem>>, vector<128x512xbf16>
    %cst_15 = arith.constant dense<0.000000e+00> : vector<128x512xf32>
    %19 = tpu.matmul %17, %18, %cst_15 {dimension_numbers = #tpu.dot_dimension_numbers<[1], [0], [0], [1], [0, 0, 1, 1], [], []>} : vector<128x128xbf16>, vector<128x512xbf16>, vector<128x512xf32> -> vector<128x512xf32>
    %c0_16 = arith.constant 0 : index
    %c0_17 = arith.constant 0 : index
    %20 = vector.load %arg8[%c0_16, %c0_17] : memref<1x512xf32, #tpu.memory_space<vmem>>, vector<1x512xf32>
    %21 = vector.broadcast %20 : vector<1x512xf32> to vector<128x512xf32>
    %22 = arith.addf %19, %21 : vector<128x512xf32>
    %cst_18 = arith.constant 0.000000e+00 : f32
    %23 = vector.broadcast %cst_18 : f32 to vector<128x512xf32>
    %24 = arith.maximumf %22, %23 : vector<128x512xf32>
    %25 = vector.shape_cast %24 : vector<128x512xf32> to vector<1x128x512xf32>
    %c128_i32 = arith.constant 128 : i32
    %26 = arith.muli %arg1, %c128_i32 : i32
    %27 = tpu.iota {dimensions = array<i32: 1>} : vector<1x128x1xi32>
    %28 = vector.broadcast %26 : i32 to vector<1x128x1xi32>
    %29 = arith.addi %28, %27 : vector<1x128x1xi32>
    %c64_i32 = arith.constant 64 : i32
    %30 = vector.broadcast %c64_i32 : i32 to vector<1x128x1xi32>
    %31 = arith.cmpi slt, %29, %30 : vector<1x128x1xi32>
    %cst_19 = arith.constant 0xFF800000 : f32
    %32 = vector.shape_cast %31 : vector<1x128x1xi1> to vector<1x128x1xi1>
    %33 = vector.broadcast %32 : vector<1x128x1xi1> to vector<1x128x512xi1>
    %34 = vector.broadcast %cst_19 : f32 to vector<1x128x512xf32>
    %35 = arith.select %33, %25, %34 : vector<1x128x512xi1>, vector<1x128x512xf32>
    %cst_20 = arith.constant dense<0xFF800000> : vector<1x512xf32>
    %36 = vector.multi_reduction <maximumf>, %35, %cst_20 [1] : vector<1x128x512xf32> to vector<1x512xf32>
    %c0_i32 = arith.constant 0 : i32
    %37 = arith.cmpi eq, %arg1, %c0_i32 : i32
    %38 = arith.extui %37 : i1 to i32
    %c0_i32_21 = arith.constant 0 : i32
    %39 = arith.cmpi ne, %38, %c0_i32_21 : i32
    scf.if %39 {
      %c0_26 = arith.constant 0 : index
      %c0_27 = arith.constant 0 : index
      %46 = vector.load %arg16[%c0_26, %c0_27] : memref<1x512xf32, #tpu.memory_space<vmem>>, vector<1x512xf32>
      tpu.vector_store %arg16[%c0_26, %c0_27], %36 {strides = array<i32>} : memref<1x512xf32, #tpu.memory_space<vmem>>, vector<1x512xf32>,
    } else {
    }
    %c0_i32_22 = arith.constant 0 : i32
    %40 = arith.cmpi ne, %arg1, %c0_i32_22 : i32
    %41 = arith.extui %40 : i1 to i32
    %c0_i32_23 = arith.constant 0 : i32
    %42 = arith.cmpi ne, %41, %c0_i32_23 : i32
    scf.if %42 {
      %c0_26 = arith.constant 0 : index
      %c0_27 = arith.constant 0 : index
      %46 = vector.load %arg16[%c0_26, %c0_27] : memref<1x512xf32, #tpu.memory_space<vmem>>, vector<1x512xf32>
      %47 = arith.maximumf %46, %36 : vector<1x512xf32>
      %c0_28 = arith.constant 0 : index
      %c0_29 = arith.constant 0 : index
      %48 = vector.load %arg16[%c0_28, %c0_29] : memref<1x512xf32, #tpu.memory_space<vmem>>, vector<1x512xf32>
      tpu.vector_store %arg16[%c0_28, %c0_29], %47 {strides = array<i32>} : memref<1x512xf32, #tpu.memory_space<vmem>>, vector<1x512xf32>,
    } else {
    }
    %c0_i32_24 = arith.constant 0 : i32
    %43 = arith.cmpi eq, %arg1, %c0_i32_24 : i32
    %44 = arith.extui %43 : i1 to i32
    %c0_i32_25 = arith.constant 0 : i32
    %45 = arith.cmpi ne, %44, %c0_i32_25 : i32
    scf.if %45 {
      %c0_26 = arith.constant 0 : index
      %c0_27 = arith.constant 0 : index
      %46 = vector.load %arg16[%c0_26, %c0_27] : memref<1x512xf32, #tpu.memory_space<vmem>>, vector<1x512xf32>
      %47 = arith.truncf %46 : vector<1x512xf32> to vector<1x512xbf16>
      %c0_28 = arith.constant 0 : index
      %c0_29 = arith.constant 0 : index
      %48 = vector.load %arg9[%c0_28, %c0_29] : memref<512x256xbf16, #tpu.memory_space<vmem>>, vector<512x256xbf16>
      %cst_30 = arith.constant dense<0.000000e+00> : vector<1x256xf32>
      %49 = tpu.matmul %47, %48, %cst_30 {dimension_numbers = #tpu.dot_dimension_numbers<[1], [0], [0], [1], [0, 0, 1, 1], [], []>} : vector<1x512xbf16>, vector<512x256xbf16>, vector<1x256xf32> -> vector<1x256xf32>
      %c0_31 = arith.constant 0 : index
      %c0_32 = arith.constant 0 : index
      %50 = vector.load %arg10[%c0_31, %c0_32] : memref<1x256xf32, #tpu.memory_space<vmem>>, vector<1x256xf32>
      %51 = arith.addf %49, %50 : vector<1x256xf32>
      %cst_33 = arith.constant 0.000000e+00 : f32
      %52 = vector.broadcast %cst_33 : f32 to vector<1x256xf32>
      %53 = arith.maximumf %51, %52 : vector<1x256xf32>
      %54 = arith.truncf %53 : vector<1x256xf32> to vector<1x256xbf16>
      %c0_34 = arith.constant 0 : index
      %c0_35 = arith.constant 0 : index
      %55 = vector.load %arg11[%c0_34, %c0_35] : memref<256x128xbf16, #tpu.memory_space<vmem>>, vector<256x128xbf16>
      %cst_36 = arith.constant dense<0.000000e+00> : vector<1x128xf32>
      %56 = tpu.matmul %54, %55, %cst_36 {dimension_numbers = #tpu.dot_dimension_numbers<[1], [0], [0], [1], [0, 0, 1, 1], [], []>} : vector<1x256xbf16>, vector<256x128xbf16>, vector<1x128xf32> -> vector<1x128xf32>
      %c0_37 = arith.constant 0 : index
      %c0_38 = arith.constant 0 : index
      %57 = vector.load %arg12[%c0_37, %c0_38] : memref<1x128xf32, #tpu.memory_space<vmem>>, vector<1x128xf32>
      %58 = arith.addf %56, %57 : vector<1x128xf32>
      %cst_39 = arith.constant 0.000000e+00 : f32
      %59 = vector.broadcast %cst_39 : f32 to vector<1x128xf32>
      %60 = arith.maximumf %58, %59 : vector<1x128xf32>
      %61 = arith.truncf %60 : vector<1x128xf32> to vector<1x128xbf16>
      %c0_40 = arith.constant 0 : index
      %c0_41 = arith.constant 0 : index
      %62 = vector.load %arg13[%c0_40, %c0_41] : memref<128x256xbf16, #tpu.memory_space<vmem>>, vector<128x256xbf16>
      %cst_42 = arith.constant dense<0.000000e+00> : vector<1x256xf32>
      %63 = tpu.matmul %61, %62, %cst_42 {dimension_numbers = #tpu.dot_dimension_numbers<[1], [0], [0], [1], [0, 0, 1, 1], [], []>} : vector<1x128xbf16>, vector<128x256xbf16>, vector<1x256xf32> -> vector<1x256xf32>
      %c0_43 = arith.constant 0 : index
      %c0_44 = arith.constant 0 : index
      %64 = vector.load %arg14[%c0_43, %c0_44] : memref<1x256xf32, #tpu.memory_space<vmem>>, vector<1x256xf32>
      %65 = arith.addf %63, %64 : vector<1x256xf32>
      %66 = vector.shape_cast %65 : vector<1x256xf32> to vector<1x1x256xf32>
      %c0_45 = arith.constant 0 : index
      %c0_46 = arith.constant 0 : index
      %c0_47 = arith.constant 0 : index
      %67 = vector.load %arg15[%c0_45, %c0_46, %c0_47] : memref<1x1x256xf32, #tpu.memory_space<vmem>>, vector<1x1x256xf32>
      tpu.vector_store %arg15[%c0_45, %c0_46, %c0_47], %66 {strides = array<i32>} : memref<1x1x256xf32, #tpu.memory_space<vmem>>, vector<1x1x256xf32>,
    } else {
    }
    return
  }
  func.func @transform_0(%arg0: i32, %arg1: i32) -> (i32, i32, i32) {
    %c0_i32 = arith.constant 0 : i32
    %c0_i32_0 = arith.constant 0 : i32
    return %arg0, %arg1, %c0_i32 : i32, i32, i32
  }
  func.func @transform_1(%arg0: i32, %arg1: i32) -> (i32, i32) {
    %c0_i32 = arith.constant 0 : i32
    %c0_i32_0 = arith.constant 0 : i32
    %c0_i32_1 = arith.constant 0 : i32
    return %c0_i32, %c0_i32_0 : i32, i32
  }
  func.func @transform_2(%arg0: i32, %arg1: i32) -> (i32, i32) {
    %c0_i32 = arith.constant 0 : i32
    %c0_i32_0 = arith.constant 0 : i32
    %c0_i32_1 = arith.constant 0 : i32
    return %c0_i32, %c0_i32_0 : i32, i32
  }
  func.func @transform_3(%arg0: i32, %arg1: i32) -> (i32, i32) {
    %c0_i32 = arith.constant 0 : i32
    %c0_i32_0 = arith.constant 0 : i32
    %c0_i32_1 = arith.constant 0 : i32
    return %c0_i32, %c0_i32_0 : i32, i32
  }
  func.func @transform_4(%arg0: i32, %arg1: i32) -> (i32, i32) {
    %c0_i32 = arith.constant 0 : i32
    %c0_i32_0 = arith.constant 0 : i32
    %c0_i32_1 = arith.constant 0 : i32
    return %c0_i32, %c0_i32_0 : i32, i32
  }
  func.func @transform_5(%arg0: i32, %arg1: i32) -> (i32, i32) {
    %c0_i32 = arith.constant 0 : i32
    %c0_i32_0 = arith.constant 0 : i32
    %c0_i32_1 = arith.constant 0 : i32
    return %c0_i32, %c0_i32_0 : i32, i32
  }
  func.func @transform_6(%arg0: i32, %arg1: i32) -> (i32, i32) {
    %c0_i32 = arith.constant 0 : i32
    %c0_i32_0 = arith.constant 0 : i32
    %c0_i32_1 = arith.constant 0 : i32
    return %c0_i32, %c0_i32_0 : i32, i32
  }
  func.func @transform_7(%arg0: i32, %arg1: i32) -> (i32, i32) {
    %c0_i32 = arith.constant 0 : i32
    %c0_i32_0 = arith.constant 0 : i32
    %c0_i32_1 = arith.constant 0 : i32
    return %c0_i32, %c0_i32_0 : i32, i32
  }
  func.func @transform_8(%arg0: i32, %arg1: i32) -> (i32, i32) {
    %c0_i32 = arith.constant 0 : i32
    %c0_i32_0 = arith.constant 0 : i32
    %c0_i32_1 = arith.constant 0 : i32
    return %c0_i32, %c0_i32_0 : i32, i32
  }
  func.func @transform_9(%arg0: i32, %arg1: i32) -> (i32, i32) {
    %c0_i32 = arith.constant 0 : i32
    %c0_i32_0 = arith.constant 0 : i32
    %c0_i32_1 = arith.constant 0 : i32
    return %c0_i32, %c0_i32_0 : i32, i32
  }
  func.func @transform_10(%arg0: i32, %arg1: i32) -> (i32, i32) {
    %c0_i32 = arith.constant 0 : i32
    %c0_i32_0 = arith.constant 0 : i32
    %c0_i32_1 = arith.constant 0 : i32
    return %c0_i32, %c0_i32_0 : i32, i32
  }
  func.func @transform_11(%arg0: i32, %arg1: i32) -> (i32, i32) {
    %c0_i32 = arith.constant 0 : i32
    %c0_i32_0 = arith.constant 0 : i32
    %c0_i32_1 = arith.constant 0 : i32
    return %c0_i32, %c0_i32_0 : i32, i32
  }
  func.func @transform_12(%arg0: i32, %arg1: i32) -> (i32, i32) {
    %c0_i32 = arith.constant 0 : i32
    %c0_i32_0 = arith.constant 0 : i32
    %c0_i32_1 = arith.constant 0 : i32
    return %c0_i32, %c0_i32_0 : i32, i32
  }
  func.func @transform_13(%arg0: i32, %arg1: i32) -> (i32, i32, i32) {
    %c0_i32 = arith.constant 0 : i32
    %c0_i32_0 = arith.constant 0 : i32
    %c0_i32_1 = arith.constant 0 : i32
    return %arg0, %c0_i32, %c0_i32_0 : i32, i32, i32
  }
}

</mosaic_0001>

<llo_original>
// kernel: tpu_custom_call.1
$region0: #{tpu_custom_call.1}
  #allocation0 [shape = 'u32[]', space=smem, size = 0x4, offset = 0x4, fixed_abs, tag = 'smem constant byte address 0x4 - core index']
  #allocation1 [shape = 'u32[72,128]{1,0:T(1,128)}', space=vmem, size = 0x9000, scoped, tag = 'internal scratch']
  #allocation2 [shape = 'f32[1,512]{1,0:T(1,128)}', space=vmem, size = 0x800, scoped, tag = 'scratch operand']
  %s0 = inlined_call_operand.vmem [shape: bf16[2,128,16], index: 0, kind: input, shape index: {}]
  %s1 = inlined_call_operand.vmem [shape: bf16[16,64], index: 1, kind: input, shape index: {}]
  %s2 = inlined_call_operand.vmem [shape: f32[1,64], index: 2, kind: input, shape index: {}]
  %s3 = inlined_call_operand.hbm [shape: bf16[64,128], index: 3, kind: input, shape index: {}]
  %s4 = inlined_call_operand.vmem [shape: f32[1,128], index: 4, kind: input, shape index: {}]
  %s5 = inlined_call_operand.hbm [shape: bf16[128,512], index: 5, kind: input, shape index: {}]
  %s6 = inlined_call_operand.vmem [shape: f32[1,512], index: 6, kind: input, shape index: {}]
  %s7 = inlined_call_operand.hbm [shape: bf16[512,256], index: 7, kind: input, shape index: {}]
  %s8 = inlined_call_operand.vmem [shape: f32[1,256], index: 8, kind: input, shape index: {}]
  %s9 = inlined_call_operand.vmem [shape: bf16[256,128], index: 9, kind: input, shape index: {}]
  %s10 = inlined_call_operand.vmem [shape: f32[1,128], index: 10, kind: input, shape index: {}]
  %s11 = inlined_call_operand.hbm [shape: bf16[128,256], index: 11, kind: input, shape index: {}]
  %s12 = inlined_call_operand.vmem [shape: f32[1,256], index: 12, kind: input, shape index: {}]
  %s13 = inlined_call_operand.hbm [shape: f32[2,1,256], index: 13, kind: output, shape index: {}]
  %s14 = sld [smem:[#allocation0]]
  $region113: #{tpu_custom_call.1} parent=0
    _
  %s16 = ssub.s32 1, %s14
  %s17 = scalar_select 0, %s16, %s14
  $region1: #{tpu_custom_call.1} parent=0
    #allocation3 [shape = 'u8[16384]{0}', space=vmem, size = 0x4000, scoped, tag = 'input window, operand 3, single buffered']
    #allocation4 [shape = 's32[2]{0}', space=sflag, size = 0x8, scoped, tag = 'scoped memory for tpu_custom_call.1']
    #allocation5 [shape = 's32[2]{0}', space=sflag, size = 0x8, scoped, tag = 'scoped memory for tpu_custom_call.1']
    #allocation6 [shape = 'u8[131072]{0}', space=vmem, size = 0x20000, scoped, tag = 'input window, operand 5, single buffered']
    #allocation7 [shape = 's32[1]{0}', space=sflag, size = 0x4, scoped, tag = 'scoped memory for tpu_custom_call.1']
    #allocation8 [shape = 'u8[262144]{0}', space=vmem, size = 0x40000, scoped, tag = 'input window, operand 7, single buffered']
    #allocation9 [shape = 'u8[65536]{0}', space=vmem, size = 0x10000, scoped, tag = 'input window, operand 11, single buffered']
    #allocation10 [shape = 's32[1]{0}', space=sflag, size = 0x4, scoped, tag = 'scoped memory for tpu_custom_call.1']
    #allocation11 [shape = 'u8[2048]{0}', space=vmem, size = 0x800, scoped, tag = 'output window, operand 0']
    %18 = vsyncpa [#allocation4], 0
    %19 = vsyncpa [#allocation7], 0
    %20 = vsyncpa [#allocation10], 0
    %21 = vsyncpa [#allocation5], 0
    %s22 = scalar_lea.sflag [#allocation5], 1
    %23 = vsyncpa %s22, 0
    loop: start=0, step=1, limit=4
    $region2: #{tpu_custom_call.1} parent=1 // loop_pre_header
      _
    $region3: #{tpu_custom_call.1} parent=1 // loop_header
      %s25 = sphi 0, %s29
      %p26 = scmp.ge.s32.totalorder %s25, 4
      %s32 = sphi 0, %s44
      %s33 = sphi 0, %s40
      %s34 = sphi 0, %s32
      %s35 = sphi 0, %s33
      %s36 = sphi 0, %s34
      %s37 = sphi 0, %s35
      %s49 = sphi 0, %s51
      %s52 = sphi 0, %s49
      %s53 = sphi 0, %s52
      %s69 = sphi 0, %s53
      %s73 = sphi 0, %s73
      %s75 = sphi 0, %s73
      %s76 = sphi 0, %s75
      %s90 = sphi 0, %s76
      %s94 = sphi 0, %s94
      %s96 = sphi 0, %s94
      %s97 = sphi 0, %s96
      %s111 = sphi 0, %s97
      %s115 = sphi 0, %s115
      %s117 = sphi 0, %s115
      %s118 = sphi 0, %s117
      %s132 = sphi 0, %s118
      %s136 = sphi 0, %s136
      %s138 = sphi 0, %s136
      %s139 = sphi 0, %s138
      %s153 = sphi 0, %s139
      %s157 = sphi 0, %s157
      %s159 = sphi 0, %s157
      %s160 = sphi 0, %s159
      %s174 = sphi 0, %s160
      %s178 = sphi 0, %s178
      %s180 = sphi 0, %s178
      %s181 = sphi 0, %s180
      %s195 = sphi 0, %s181
      %s199 = sphi 0, %s199
      %s201 = sphi 0, %s199
      %s202 = sphi 0, %s201
      %s216 = sphi 0, %s202
      %s220 = sphi 0, %s220
      %s222 = sphi 0, %s220
      %s223 = sphi 0, %s222
      %s237 = sphi 0, %s223
      %s241 = sphi 0, %s241
      %s243 = sphi 0, %s241
      %s244 = sphi 0, %s243
      %s258 = sphi 0, %s244
      %s262 = sphi 0, %s262
      %s264 = sphi 0, %s262
      %s265 = sphi 0, %s264
      %s279 = sphi 0, %s265
      %s283 = sphi 0, %s283
      %s285 = sphi 0, %s283
      %s286 = sphi 0, %s285
      %s300 = sphi 0, %s286
      %s304 = sphi 0, %s304
      %s306 = sphi 0, %s304
      %s307 = sphi 0, %s306
      %s321 = sphi 0, %s307
      %s327 = sphi 0, %s329
      %s330 = sphi 0, %s327
      %s331 = sphi 0, %s330
      %s347 = sphi 0, %s331
    $region4: #{tpu_custom_call.1} parent=1 // loop_header_branch
      %28 = sbr.rel (%p26) target = $region8
    $region5: #{tpu_custom_call.1} parent=1 // loop_body
      %s30 = ssub.s32 %s25, 1
      %s31 = ssub.s32 %s25, 2
      %s38 = sadd.s32 1, %s33
      %p39 = scmp.ge.s32.totalorder %s38, 1
      %s40 = scalar_select %p39, 0, %s38
      %s41 = sadd.s32 1, %s32
      %s42 = scalar_select %p39, %s41, %s32
      %p43 = scmp.ge.s32.totalorder %s42, 2
      %s44 = scalar_select %p43, 0, %s42
      %s45 = ssub.s32 %s32, %s44
      %s46 = ssub.s32 %s33, %s40
      %s47 = sor.u32 %s45, %s46
      %p48 = scmp.eq.s32.totalorder %s47, 0
      %s50 = sadd.s32 %s49, 1
      %s51 = scalar_select %p48, %s49, %s50
      %p54 = pneg %p48
      %p55 = scmp.eq.s32.totalorder %s25, 1
      %p56 = por %p54, %p55
      %p57 = scmp.ne.s32.totalorder %s49, %s52
      %p58 = scmp.eq.s32.totalorder %s25, 0
      %p59 = por %p57, %p58
      %p60 = scmp.ne.s32.totalorder %s49, %s52
      %p61 = scmp.eq.s32.totalorder %s30, 1
      %p62 = por %p60, %p61
      %p63 = scmp.ne.s32.totalorder %s52, %s53
      %p64 = scmp.eq.s32.totalorder %s30, 0
      %p65 = por %p63, %p64
      %p66 = scmp.ne.s32.totalorder %s52, %s53
      %p67 = scmp.eq.s32.totalorder %s31, 1
      %p68 = por %p66, %p67
      %p70 = scmp.ne.s32.totalorder %s53, %s69
      %p71 = scmp.eq.s32.totalorder %s31, 0
      %p72 = por %p70, %p71
      %s74 = sadd.s32 %s73, 1
      %p77 = scmp.eq.s32.totalorder %s25, 1
      %p78 = scmp.ne.s32.totalorder %s73, %s75
      %p79 = scmp.eq.s32.totalorder %s25, 0
      %p80 = por %p78, %p79
      %p81 = scmp.ne.s32.totalorder %s73, %s75
      %p82 = scmp.eq.s32.totalorder %s30, 1
      %p83 = por %p81, %p82
      %p84 = scmp.ne.s32.totalorder %s75, %s76
      %p85 = scmp.eq.s32.totalorder %s30, 0
      %p86 = por %p84, %p85
      %p87 = scmp.ne.s32.totalorder %s75, %s76
      %p88 = scmp.eq.s32.totalorder %s31, 1
      %p89 = por %p87, %p88
      %p91 = scmp.ne.s32.totalorder %s76, %s90
      %p92 = scmp.eq.s32.totalorder %s31, 0
      %p93 = por %p91, %p92
      %s95 = sadd.s32 %s94, 1
      %p98 = scmp.eq.s32.totalorder %s25, 1
      %p99 = scmp.ne.s32.totalorder %s94, %s96
      %p100 = scmp.eq.s32.totalorder %s25, 0
      %p101 = por %p99, %p100
      %p102 = scmp.ne.s32.totalorder %s94, %s96
      %p103 = scmp.eq.s32.totalorder %s30, 1
      %p104 = por %p102, %p103
      %p105 = scmp.ne.s32.totalorder %s96, %s97
      %p106 = scmp.eq.s32.totalorder %s30, 0
      %p107 = por %p105, %p106
      %p108 = scmp.ne.s32.totalorder %s96, %s97
      %p109 = scmp.eq.s32.totalorder %s31, 1
      %p110 = por %p108, %p109
      %p112 = scmp.ne.s32.totalorder %s97, %s111
      %p113 = scmp.eq.s32.totalorder %s31, 0
      %p114 = por %p112, %p113
      %s116 = sadd.s32 %s115, 1
      %p119 = scmp.eq.s32.totalorder %s25, 1
      %p120 = scmp.ne.s32.totalorder %s115, %s117
      %p121 = scmp.eq.s32.totalorder %s25, 0
      %p122 = por %p120, %p121
      %p123 = scmp.ne.s32.totalorder %s115, %s117
      %p124 = scmp.eq.s32.totalorder %s30, 1
      %p125 = por %p123, %p124
      %p126 = scmp.ne.s32.totalorder %s117, %s118
      %p127 = scmp.eq.s32.totalorder %s30, 0
      %p128 = por %p126, %p127
      %p129 = scmp.ne.s32.totalorder %s117, %s118
      %p130 = scmp.eq.s32.totalorder %s31, 1
      %p131 = por %p129, %p130
      %p133 = scmp.ne.s32.totalorder %s118, %s132
      %p134 = scmp.eq.s32.totalorder %s31, 0
      %p135 = por %p133, %p134
      %s137 = sadd.s32 %s136, 1
      %p140 = scmp.eq.s32.totalorder %s25, 1
      %p141 = scmp.ne.s32.totalorder %s136, %s138
      %p142 = scmp.eq.s32.totalorder %s25, 0
      %p143 = por %p141, %p142
      %p144 = scmp.ne.s32.totalorder %s136, %s138
      %p145 = scmp.eq.s32.totalorder %s30, 1
      %p146 = por %p144, %p145
      %p147 = scmp.ne.s32.totalorder %s138, %s139
      %p148 = scmp.eq.s32.totalorder %s30, 0
      %p149 = por %p147, %p148
      %p150 = scmp.ne.s32.totalorder %s138, %s139
      %p151 = scmp.eq.s32.totalorder %s31, 1
      %p152 = por %p150, %p151
      %p154 = scmp.ne.s32.totalorder %s139, %s153
      %p155 = scmp.eq.s32.totalorder %s31, 0
      %p156 = por %p154, %p155
      %s158 = sadd.s32 %s157, 1
      %p161 = scmp.eq.s32.totalorder %s25, 1
      %p162 = scmp.ne.s32.totalorder %s157, %s159
      %p163 = scmp.eq.s32.totalorder %s25, 0
      %p164 = por %p162, %p163
      %p165 = scmp.ne.s32.totalorder %s157, %s159
      %p166 = scmp.eq.s32.totalorder %s30, 1
      %p167 = por %p165, %p166
      %p168 = scmp.ne.s32.totalorder %s159, %s160
      %p169 = scmp.eq.s32.totalorder %s30, 0
      %p170 = por %p168, %p169
      %p171 = scmp.ne.s32.totalorder %s159, %s160
      %p172 = scmp.eq.s32.totalorder %s31, 1
      %p173 = por %p171, %p172
      %p175 = scmp.ne.s32.totalorder %s160, %s174
      %p176 = scmp.eq.s32.totalorder %s31, 0
      %p177 = por %p175, %p176
      %s179 = sadd.s32 %s178, 1
      %p182 = scmp.eq.s32.totalorder %s25, 1
      %p183 = scmp.ne.s32.totalorder %s178, %s180
      %p184 = scmp.eq.s32.totalorder %s25, 0
      %p185 = por %p183, %p184
      %p186 = scmp.ne.s32.totalorder %s178, %s180
      %p187 = scmp.eq.s32.totalorder %s30, 1
      %p188 = por %p186, %p187
      %p189 = scmp.ne.s32.totalorder %s180, %s181
      %p190 = scmp.eq.s32.totalorder %s30, 0
      %p191 = por %p189, %p190
      %p192 = scmp.ne.s32.totalorder %s180, %s181
      %p193 = scmp.eq.s32.totalorder %s31, 1
      %p194 = por %p192, %p193
      %p196 = scmp.ne.s32.totalorder %s181, %s195
      %p197 = scmp.eq.s32.totalorder %s31, 0
      %p198 = por %p196, %p197
      %s200 = sadd.s32 %s199, 1
      %p203 = scmp.eq.s32.totalorder %s25, 1
      %p204 = scmp.ne.s32.totalorder %s199, %s201
      %p205 = scmp.eq.s32.totalorder %s25, 0
      %p206 = por %p204, %p205
      %p207 = scmp.ne.s32.totalorder %s199, %s201
      %p208 = scmp.eq.s32.totalorder %s30, 1
      %p209 = por %p207, %p208
      %p210 = scmp.ne.s32.totalorder %s201, %s202
      %p211 = scmp.eq.s32.totalorder %s30, 0
      %p212 = por %p210, %p211
      %p213 = scmp.ne.s32.totalorder %s201, %s202
      %p214 = scmp.eq.s32.totalorder %s31, 1
      %p215 = por %p213, %p214
      %p217 = scmp.ne.s32.totalorder %s202, %s216
      %p218 = scmp.eq.s32.totalorder %s31, 0
      %p219 = por %p217, %p218
      %s221 = sadd.s32 %s220, 1
      %p224 = scmp.eq.s32.totalorder %s25, 1
      %p225 = scmp.ne.s32.totalorder %s220, %s222
      %p226 = scmp.eq.s32.totalorder %s25, 0
      %p227 = por %p225, %p226
      %p228 = scmp.ne.s32.totalorder %s220, %s222
      %p229 = scmp.eq.s32.totalorder %s30, 1
      %p230 = por %p228, %p229
      %p231 = scmp.ne.s32.totalorder %s222, %s223
      %p232 = scmp.eq.s32.totalorder %s30, 0
      %p233 = por %p231, %p232
      %p234 = scmp.ne.s32.totalorder %s222, %s223
      %p235 = scmp.eq.s32.totalorder %s31, 1
      %p236 = por %p234, %p235
      %p238 = scmp.ne.s32.totalorder %s223, %s237
      %p239 = scmp.eq.s32.totalorder %s31, 0
      %p240 = por %p238, %p239
      %s242 = sadd.s32 %s241, 1
      %p245 = scmp.eq.s32.totalorder %s25, 1
      %p246 = scmp.ne.s32.totalorder %s241, %s243
      %p247 = scmp.eq.s32.totalorder %s25, 0
      %p248 = por %p246, %p247
      %p249 = scmp.ne.s32.totalorder %s241, %s243
      %p250 = scmp.eq.s32.totalorder %s30, 1
      %p251 = por %p249, %p250
      %p252 = scmp.ne.s32.totalorder %s243, %s244
      %p253 = scmp.eq.s32.totalorder %s30, 0
      %p254 = por %p252, %p253
      %p255 = scmp.ne.s32.totalorder %s243, %s244
      %p256 = scmp.eq.s32.totalorder %s31, 1
      %p257 = por %p255, %p256
      %p259 = scmp.ne.s32.totalorder %s244, %s258
      %p260 = scmp.eq.s32.totalorder %s31, 0
      %p261 = por %p259, %p260
      %s263 = sadd.s32 %s262, 1
      %p266 = scmp.eq.s32.totalorder %s25, 1
      %p267 = scmp.ne.s32.totalorder %s262, %s264
      %p268 = scmp.eq.s32.totalorder %s25, 0
      %p269 = por %p267, %p268
      %p270 = scmp.ne.s32.totalorder %s262, %s264
      %p271 = scmp.eq.s32.totalorder %s30, 1
      %p272 = por %p270, %p271
      %p273 = scmp.ne.s32.totalorder %s264, %s265
      %p274 = scmp.eq.s32.totalorder %s30, 0
      %p275 = por %p273, %p274
      %p276 = scmp.ne.s32.totalorder %s264, %s265
      %p277 = scmp.eq.s32.totalorder %s31, 1
      %p278 = por %p276, %p277
      %p280 = scmp.ne.s32.totalorder %s265, %s279
      %p281 = scmp.eq.s32.totalorder %s31, 0
      %p282 = por %p280, %p281
      %s284 = sadd.s32 %s283, 1
      %p287 = scmp.eq.s32.totalorder %s25, 1
      %p288 = scmp.ne.s32.totalorder %s283, %s285
      %p289 = scmp.eq.s32.totalorder %s25, 0
      %p290 = por %p288, %p289
      %p291 = scmp.ne.s32.totalorder %s283, %s285
      %p292 = scmp.eq.s32.totalorder %s30, 1
      %p293 = por %p291, %p292
      %p294 = scmp.ne.s32.totalorder %s285, %s286
      %p295 = scmp.eq.s32.totalorder %s30, 0
      %p296 = por %p294, %p295
      %p297 = scmp.ne.s32.totalorder %s285, %s286
      %p298 = scmp.eq.s32.totalorder %s31, 1
      %p299 = por %p297, %p298
      %p301 = scmp.ne.s32.totalorder %s286, %s300
      %p302 = scmp.eq.s32.totalorder %s31, 0
      %p303 = por %p301, %p302
      %s305 = sadd.s32 %s304, 1
      %p308 = scmp.eq.s32.totalorder %s25, 1
      %p309 = scmp.ne.s32.totalorder %s304, %s306
      %p310 = scmp.eq.s32.totalorder %s25, 0
      %p311 = por %p309, %p310
      %p312 = scmp.ne.s32.totalorder %s304, %s306
      %p313 = scmp.eq.s32.totalorder %s30, 1
      %p314 = por %p312, %p313
      %p315 = scmp.ne.s32.totalorder %s306, %s307
      %p316 = scmp.eq.s32.totalorder %s30, 0
      %p317 = por %p315, %p316
      %p318 = scmp.ne.s32.totalorder %s306, %s307
      %p319 = scmp.eq.s32.totalorder %s31, 1
      %p320 = por %p318, %p319
      %p322 = scmp.ne.s32.totalorder %s307, %s321
      %p323 = scmp.eq.s32.totalorder %s31, 0
      %p324 = por %p322, %p323
      %s325 = ssub.s32 %s32, %s44
      %p326 = scmp.eq.s32.totalorder %s325, 0
      %s328 = sadd.s32 %s327, 1
      %s329 = scalar_select %p326, %s327, %s328
      %p332 = pneg %p326
      %p333 = scmp.eq.s32.totalorder %s25, 1
      %p334 = por %p332, %p333
      %p335 = scmp.ne.s32.totalorder %s327, %s330
      %p336 = scmp.eq.s32.totalorder %s25, 0
      %p337 = por %p335, %p336
      %p338 = scmp.ne.s32.totalorder %s327, %s330
      %p339 = scmp.eq.s32.totalorder %s30, 1
      %p340 = por %p338, %p339
      %p341 = scmp.ne.s32.totalorder %s330, %s331
      %p342 = scmp.eq.s32.totalorder %s30, 0
      %p343 = por %p341, %p342
      %p344 = scmp.ne.s32.totalorder %s330, %s331
      %p345 = scmp.eq.s32.totalorder %s31, 1
      %p346 = por %p344, %p345
      %p348 = scmp.ne.s32.totalorder %s331, %s347
      %p349 = scmp.eq.s32.totalorder %s31, 0
      %p350 = por %p348, %p349
      %p351 = scmp.le.s32.totalorder 1, %s25
      %p352 = scmp.lt.s32.totalorder %s25, 3
      %p353 = pnand %p351, %p352
      %p354 = pneg %p353
      // Predicated region
      $region9: #{tpu_custom_call.1} parent=5 // pred_check
        _
      $region10: #{tpu_custom_call.1} parent=5 // pred_check_branch
        %356 = sbr.rel (%p353) target = $region12
      $region11: #{tpu_custom_call.1} parent=5 // pred_region
        %s357 = ssub.s32 %s25, 1
        // Predicated region
        $region13: #{tpu_custom_call.1} parent=11 // pred_check
          %p358 = pneg %p86
        $region14: #{tpu_custom_call.1} parent=11 // pred_check_branch
          %360 = sbr.rel (%p358) target = $region16
        $region15: #{tpu_custom_call.1} parent=11 // pred_region
          _
        $region16: #{tpu_custom_call.1} parent=11 // pred_fallthru
          _
        // Predicated region
        $region17: #{tpu_custom_call.1} parent=11 // pred_check
          %p361 = pneg %p107
        $region18: #{tpu_custom_call.1} parent=11 // pred_check_branch
          %363 = sbr.rel (%p361) target = $region20
        $region19: #{tpu_custom_call.1} parent=11 // pred_region
          _
        $region20: #{tpu_custom_call.1} parent=11 // pred_fallthru
          _
        // Predicated region
        $region21: #{tpu_custom_call.1} parent=11 // pred_check
          %p364 = pneg %p128
        $region22: #{tpu_custom_call.1} parent=11 // pred_check_branch
          %366 = sbr.rel (%p364) target = $region24
        $region23: #{tpu_custom_call.1} parent=11 // pred_region
          %368 = vsyncadd [#allocation4], 0
          %s369 = sshll.u32 %s3, 4
          %s370 = int_to_ptr.hbm [resolvable:$true] %s369
          %s371 = sshll.u32 [#allocation3], 4
          %s372 = int_to_ptr.vmem [resolvable:$true] %s371
          %377 = dma.hbm_to_vmem [thread:$0]  %s370, 512, %s372, [#allocation4], 64, 64, 4
        $region24: #{tpu_custom_call.1} parent=11 // pred_fallthru
          _
        // Predicated region
        $region25: #{tpu_custom_call.1} parent=11 // pred_check
          %p378 = pneg %p149
        $region26: #{tpu_custom_call.1} parent=11 // pred_check_branch
          %380 = sbr.rel (%p378) target = $region28
        $region27: #{tpu_custom_call.1} parent=11 // pred_region
          _
        $region28: #{tpu_custom_call.1} parent=11 // pred_fallthru
          _
        // Predicated region
        $region29: #{tpu_custom_call.1} parent=11 // pred_check
          %p381 = pneg %p170
        $region30: #{tpu_custom_call.1} parent=11 // pred_check_branch
          %383 = sbr.rel (%p381) target = $region32
        $region31: #{tpu_custom_call.1} parent=11 // pred_region
          %385 = vsyncadd [#allocation7], 0
          %s386 = sshll.u32 %s5, 4
          %s387 = int_to_ptr.hbm [resolvable:$true] %s386
          %s388 = sshll.u32 [#allocation6], 4
          %s389 = int_to_ptr.vmem [resolvable:$true] %s388
          %394 = dma.hbm_to_vmem [thread:$0]  %s387, 4096, %s389, [#allocation7], 256, 256, 16
        $region32: #{tpu_custom_call.1} parent=11 // pred_fallthru
          _
        // Predicated region
        $region33: #{tpu_custom_call.1} parent=11 // pred_check
          %p395 = pneg %p191
        $region34: #{tpu_custom_call.1} parent=11 // pred_check_branch
          %397 = sbr.rel (%p395) target = $region36
        $region35: #{tpu_custom_call.1} parent=11 // pred_region
          _
        $region36: #{tpu_custom_call.1} parent=11 // pred_fallthru
          _
        // Predicated region
        $region37: #{tpu_custom_call.1} parent=11 // pred_check
          %p398 = pneg %p212
        $region38: #{tpu_custom_call.1} parent=11 // pred_check_branch
          %400 = sbr.rel (%p398) target = $region40
        $region39: #{tpu_custom_call.1} parent=11 // pred_region
          %402 = vsyncadd [#allocation7], 0
          %s403 = sshll.u32 %s7, 4
          %s404 = int_to_ptr.hbm [resolvable:$true] %s403
          %s405 = sshll.u32 [#allocation8], 4
          %s406 = int_to_ptr.vmem [resolvable:$true] %s405
          %411 = dma.hbm_to_vmem [thread:$0]  %s404, 8192, %s406, [#allocation7], 128, 128, 8
        $region40: #{tpu_custom_call.1} parent=11 // pred_fallthru
          _
        // Predicated region
        $region41: #{tpu_custom_call.1} parent=11 // pred_check
          %p412 = pneg %p233
        $region42: #{tpu_custom_call.1} parent=11 // pred_check_branch
          %414 = sbr.rel (%p412) target = $region44
        $region43: #{tpu_custom_call.1} parent=11 // pred_region
          _
        $region44: #{tpu_custom_call.1} parent=11 // pred_fallthru
          _
        // Predicated region
        $region45: #{tpu_custom_call.1} parent=11 // pred_check
          %p415 = pneg %p254
        $region46: #{tpu_custom_call.1} parent=11 // pred_check_branch
          %417 = sbr.rel (%p415) target = $region48
        $region47: #{tpu_custom_call.1} parent=11 // pred_region
          _
        $region48: #{tpu_custom_call.1} parent=11 // pred_fallthru
          _
        // Predicated region
        $region49: #{tpu_custom_call.1} parent=11 // pred_check
          %p418 = pneg %p275
        $region50: #{tpu_custom_call.1} parent=11 // pred_check_branch
          %420 = sbr.rel (%p418) target = $region52
        $region51: #{tpu_custom_call.1} parent=11 // pred_region
          _
        $region52: #{tpu_custom_call.1} parent=11 // pred_fallthru
          _
        // Predicated region
        $region53: #{tpu_custom_call.1} parent=11 // pred_check
          %p421 = pneg %p296
        $region54: #{tpu_custom_call.1} parent=11 // pred_check_branch
          %423 = sbr.rel (%p421) target = $region56
        $region55: #{tpu_custom_call.1} parent=11 // pred_region
          %425 = vsyncadd [#allocation10], 0
          %s426 = sshll.u32 %s11, 4
          %s427 = int_to_ptr.hbm [resolvable:$true] %s426
          %s428 = sshll.u32 [#allocation9], 4
          %s429 = int_to_ptr.vmem [resolvable:$true] %s428
          %434 = dma.hbm_to_vmem [thread:$0]  %s427, 2048, %s429, [#allocation10], 128, 128, 8
        $region56: #{tpu_custom_call.1} parent=11 // pred_fallthru
          _
        // Predicated region
        $region57: #{tpu_custom_call.1} parent=11 // pred_check
          %p435 = pneg %p317
        $region58: #{tpu_custom_call.1} parent=11 // pred_check_branch
          %437 = sbr.rel (%p435) target = $region60
        $region59: #{tpu_custom_call.1} parent=11 // pred_region
          _
        $region60: #{tpu_custom_call.1} parent=11 // pred_fallthru
          _
      $region12: #{tpu_custom_call.1} parent=5 // pred_fallthru
        _
      %p438 = scmp.lt.s32.totalorder %s25, 2
      // Predicated region
      $region61: #{tpu_custom_call.1} parent=5 // pred_check
        %p439 = pneg %p438
      $region62: #{tpu_custom_call.1} parent=5 // pred_check_branch
        %441 = sbr.rel (%p439) target = $region64
      $region63: #{tpu_custom_call.1} parent=5 // pred_region
        // Predicated region
        $region65: #{tpu_custom_call.1} parent=63 // pred_check
          %p442 = pneg %p59
        $region66: #{tpu_custom_call.1} parent=63 // pred_check_branch
          %444 = sbr.rel (%p442) target = $region68
        $region67: #{tpu_custom_call.1} parent=63 // pred_region
          %s445 = smul.u32 16, %s33
          %p446 = scmp.lt.s32.totalorder %s32, 1
          %s447 = scalar_select %p446, %s32, 1
          %p448 = scmp.lt.s32.totalorder %s445, 15
          %s449 = scalar_select %p448, %s445, 15
          %s450 = smul.addr %s447, 16
          %s451 = sadd.s32 %s449, %s450
          %s452 = smul.addr %s451, 4
          %s453 = scalar_lea.vmem %s0, %s452
          %s454 = smul.u32 16, %s33
        $region68: #{tpu_custom_call.1} parent=63 // pred_fallthru
          _
      $region64: #{tpu_custom_call.1} parent=5 // pred_fallthru
        _
      %p455 = scmp.le.s32.totalorder 1, %s25
      %p456 = scmp.lt.s32.totalorder %s25, 3
      %p457 = pnand %p455, %p456
      %p458 = pneg %p457
      // Predicated region
      $region69: #{tpu_custom_call.1} parent=5 // pred_check
        _
      $region70: #{tpu_custom_call.1} parent=5 // pred_check_branch
        %460 = sbr.rel (%p457) target = $region72
      $region71: #{tpu_custom_call.1} parent=5 // pred_region
        %s461 = ssub.s32 %s25, 1
        // Predicated region
        $region73: #{tpu_custom_call.1} parent=71 // pred_check
          %p462 = pneg %p128
        $region74: #{tpu_custom_call.1} parent=71 // pred_check_branch
          %464 = sbr.rel (%p462) target = $region76
        $region75: #{tpu_custom_call.1} parent=71 // pred_region
          %466 = dma.done [#allocation4], 512
        $region76: #{tpu_custom_call.1} parent=71 // pred_fallthru
          _
        // Predicated region
        $region77: #{tpu_custom_call.1} parent=71 // pred_check
          %p467 = pneg %p170
        $region78: #{tpu_custom_call.1} parent=71 // pred_check_branch
          %469 = sbr.rel (%p467) target = $region80
        $region79: #{tpu_custom_call.1} parent=71 // pred_region
          %471 = dma.done [#allocation7], 4096
        $region80: #{tpu_custom_call.1} parent=71 // pred_fallthru
          _
        // Predicated region
        $region81: #{tpu_custom_call.1} parent=71 // pred_check
          %p472 = pneg %p212
        $region82: #{tpu_custom_call.1} parent=71 // pred_check_branch
          %474 = sbr.rel (%p472) target = $region84
        $region83: #{tpu_custom_call.1} parent=71 // pred_region
          %476 = dma.done [#allocation7], 8192
        $region84: #{tpu_custom_call.1} parent=71 // pred_fallthru
          _
        // Predicated region
        $region85: #{tpu_custom_call.1} parent=71 // pred_check
          %p477 = pneg %p296
        $region86: #{tpu_custom_call.1} parent=71 // pred_check_branch
          %479 = sbr.rel (%p477) target = $region88
        $region87: #{tpu_custom_call.1} parent=71 // pred_region
          %481 = dma.done [#allocation10], 2048
        $region88: #{tpu_custom_call.1} parent=71 // pred_fallthru
          _
        %s482 = smul.u32 16, %s35
        %p483 = scmp.lt.s32.totalorder %s34, 1
        %s484 = scalar_select %p483, %s34, 1
        %p485 = scmp.lt.s32.totalorder %s482, 15
        %s486 = scalar_select %p485, %s482, 15
        %s487 = smul.addr %s484, 16
        %s488 = sadd.s32 %s486, %s487
        %s489 = smul.addr %s488, 4
        %s490 = scalar_lea.vmem %s0, %s489
        %p491 = pneg %p65
        %p492 = pneg %p62
        %p493 = pneg %p86
        %p494 = pneg %p83
        %p495 = pneg %p107
        %p496 = pneg %p104
        %p497 = pneg %p128
        %p498 = pneg %p125
        %p499 = pneg %p149
        %p500 = pneg %p146
        %p501 = pneg %p170
        %p502 = pneg %p167
        %p503 = pneg %p191
        %p504 = pneg %p188
        %p505 = pneg %p212
        %p506 = pneg %p209
        %p507 = pneg %p233
        %p508 = pneg %p230
        %p509 = pneg %p254
        %p510 = pneg %p251
        %p511 = pneg %p275
        %p512 = pneg %p272
        %p513 = pneg %p296
        %p514 = pneg %p293
        %p515 = pneg %p317
        %p516 = pneg %p314
        %p517 = pneg %p343
        %p518 = pneg %p340
        %s519 = sand.u32 %s330, 1
        %s520 = scalar_lea.sflag [#allocation5], %s519
        %s521 = sand.u32 %s330, 1
        %s522 = smul.addr %s521, 2
        %s523 = scalar_lea.vmem [#allocation11], %s522
        %s524 = smul.u32 16, %s35
        %p525 = scmp.lt.s32.totalorder %s34, 1
        %s526 = scalar_select %p525, %s34, 1
        %p527 = scmp.lt.s32.totalorder %s524, 15
        %s528 = scalar_select %p527, %s524, 15
        %s529 = smul.addr %s526, 16
        %s530 = sadd.s32 %s528, %s529
        %s531 = smul.addr %s530, 4
        %s532 = scalar_lea.vmem %s0, %s531
        %s533 = smul.u32 16, %s35
        %v535 = vld [vmem:[%s532] sm:$0xf]
        %v536 = vld [vmem:[%s532 + $0x4] sm:$0xf]
        %v537 = vld [vmem:[%s532 + $0x8] sm:$0xf]
        %v538 = vld [vmem:[%s532 + $0xc] sm:$0xf]
        %v539 = vld [vmem:[%s532 + $0x10] sm:$0xf]
        %v540 = vld [vmem:[%s532 + $0x14] sm:$0xf]
        %v541 = vld [vmem:[%s532 + $0x18] sm:$0xf]
        %v542 = vld [vmem:[%s532 + $0x1c] sm:$0xf]
        %v543 = vld [vmem:[%s532 + $0x20] sm:$0xf]
        %v544 = vld [vmem:[%s532 + $0x24] sm:$0xf]
        %v545 = vld [vmem:[%s532 + $0x28] sm:$0xf]
        %v546 = vld [vmem:[%s532 + $0x2c] sm:$0xf]
        %v547 = vld [vmem:[%s532 + $0x30] sm:$0xf]
        %v548 = vld [vmem:[%s532 + $0x34] sm:$0xf]
        %v549 = vld [vmem:[%s532 + $0x38] sm:$0xf]
        %v550 = vld [vmem:[%s532 + $0x3c] sm:$0xf]
        %v551 = vld [vmem:[%s1] sm:$0xf]
        %v552 = vld [vmem:[%s1 + $0x4] sm:$0xf]
        %v553 = vld [vmem:[%s2] sm:$0x1]
        %v555 = vperm.slane %v553, 0
        %v573 = vunpack.c.l.b16 %v535
        %v574 = vunpack.c.l.b16 %v536
        %v575 = vunpack.c.l.b16 %v537
        %v576 = vunpack.c.l.b16 %v538
        %v577 = vunpack.c.l.b16 %v539
        %v578 = vunpack.c.l.b16 %v540
        %v579 = vunpack.c.l.b16 %v541
        %v580 = vunpack.c.l.b16 %v542
        %v581 = vunpack.c.l.b16 %v543
        %v582 = vunpack.c.l.b16 %v544
        %v583 = vunpack.c.l.b16 %v545
        %v584 = vunpack.c.l.b16 %v546
        %v585 = vunpack.c.l.b16 %v547
        %v586 = vunpack.c.l.b16 %v548
        %v587 = vunpack.c.l.b16 %v549
        %v588 = vunpack.c.l.b16 %v550
        %v589 = vpack.c.b16 %v574, %v573
        %v590 = vpack.c.b16 %v576, %v575
        %v591 = vpack.c.b16 %v578, %v577
        %v592 = vpack.c.b16 %v580, %v579
        %v593 = vpack.c.b16 %v582, %v581
        %v594 = vpack.c.b16 %v584, %v583
        %v595 = vpack.c.b16 %v586, %v585
        %v596 = vpack.c.b16 %v588, %v587
        %v599 = vunpack.c.l.b16 %v551
        %v600 = vunpack.c.l.b16 %v552
        %v601 = vpack.c.b16 %v600, %v599
        %vm603 = vcmask 130048
        %v605 = vsel %vm603, %v589, 0
        %v608 = vsel %vm603, %v590, 0
        %v611 = vsel %vm603, %v591, 0
        %v614 = vsel %vm603, %v592, 0
        %v617 = vsel %vm603, %v593, 0
        %v620 = vsel %vm603, %v594, 0
        %v623 = vsel %vm603, %v595, 0
        %v626 = vsel %vm603, %v596, 0
        %628 = vmatpush.bf16.msra.mxu0 0
        %629 = vmatpush.bf16.msra.mxu0 0
        %630 = vmatpush.bf16.msra.mxu0 0
        %631 = vmatpush.bf16.msra.mxu0 0
        %632 = vmatpush.bf16.msra.mxu0 0
        %633 = vmatpush.bf16.msra.mxu0 0
        %634 = vmatpush.bf16.msra.mxu0 0
        %635 = vmatpush.bf16.msra.mxu0 %v601
        %636 = vmatmul.bf16.gmra.mxu0 %v605
        %v637 = vpop.f32.mrf.mxu0
        %v638 = vadd.f32 %v555, %v637
        %v639 = vpop.f32.mrf.mxu0
        %v640 = vadd.f32 %v555, %v639
        %641 = vmatmul.bf16.gmra.mxu0 %v608
        %v642 = vpop.f32.mrf.mxu0
        %v643 = vadd.f32 %v555, %v642
        %v644 = vpop.f32.mrf.mxu0
        %v645 = vadd.f32 %v555, %v644
        %646 = vmatmul.bf16.gmra.mxu0 %v611
        %v647 = vpop.f32.mrf.mxu0
        %v648 = vadd.f32 %v555, %v647
        %v649 = vpop.f32.mrf.mxu0
        %v650 = vadd.f32 %v555, %v649
        %651 = vmatmul.bf16.gmra.mxu0 %v614
        %v652 = vpop.f32.mrf.mxu0
        %v653 = vadd.f32 %v555, %v652
        %v654 = vpop.f32.mrf.mxu0
        %v655 = vadd.f32 %v555, %v654
        %656 = vmatmul.bf16.gmra.mxu0 %v617
        %v657 = vpop.f32.mrf.mxu0
        %v658 = vadd.f32 %v555, %v657
        %v659 = vpop.f32.mrf.mxu0
        %v660 = vadd.f32 %v555, %v659
        %661 = vmatmul.bf16.gmra.mxu0 %v620
        %v662 = vpop.f32.mrf.mxu0
        %v663 = vadd.f32 %v555, %v662
        %v664 = vpop.f32.mrf.mxu0
        %v665 = vadd.f32 %v555, %v664
        %666 = vmatmul.bf16.gmra.mxu0 %v623
        %v667 = vpop.f32.mrf.mxu0
        %v668 = vadd.f32 %v555, %v667
        %v669 = vpop.f32.mrf.mxu0
        %v670 = vadd.f32 %v555, %v669
        %671 = vmatmul.bf16.gmra.mxu0 %v626
        %v672 = vpop.f32.mrf.mxu0
        %v673 = vadd.f32 %v555, %v672
        %v674 = vpop.f32.mrf.mxu0
        %v675 = vadd.f32 %v555, %v674
        %676 = vdwg.mxu0
        %v677 = vmax.f32 %v638, 0.0
        %v678 = vmax.f32 %v640, 0.0
        %v679 = vmax.f32 %v643, 0.0
        %v680 = vmax.f32 %v645, 0.0
        %v681 = vmax.f32 %v648, 0.0
        %v682 = vmax.f32 %v650, 0.0
        %v683 = vmax.f32 %v653, 0.0
        %v684 = vmax.f32 %v655, 0.0
        %v685 = vmax.f32 %v658, 0.0
        %v686 = vmax.f32 %v660, 0.0
        %v687 = vmax.f32 %v663, 0.0
        %v688 = vmax.f32 %v665, 0.0
        %v689 = vmax.f32 %v668, 0.0
        %v690 = vmax.f32 %v670, 0.0
        %v691 = vmax.f32 %v673, 0.0
        %v692 = vmax.f32 %v675, 0.0
        %v693 = vpack.c.bf16 %v678, %v677
        %v694 = vpack.c.bf16 %v680, %v679
        %v695 = vpack.c.bf16 %v682, %v681
        %v696 = vpack.c.bf16 %v684, %v683
        %v697 = vpack.c.bf16 %v686, %v685
        %v698 = vpack.c.bf16 %v688, %v687
        %v699 = vpack.c.bf16 %v690, %v689
        %v700 = vpack.c.bf16 %v692, %v691
        %v701 = vld [vmem:[#allocation3] sm:$0xf]
        %v702 = vld [vmem:[#allocation3 + $0x4] sm:$0xf]
        %v703 = vld [vmem:[#allocation3 + $0x8] sm:$0xf]
        %v704 = vld [vmem:[#allocation3 + $0xc] sm:$0xf]
        %v705 = vld [vmem:[#allocation3 + $0x10] sm:$0xf]
        %v706 = vld [vmem:[#allocation3 + $0x14] sm:$0xf]
        %v707 = vld [vmem:[#allocation3 + $0x18] sm:$0xf]
        %v708 = vld [vmem:[#allocation3 + $0x1c] sm:$0xf]
        %v709 = vld [vmem:[%s4] sm:$0x1]
        %v711 = vperm.slane %v709, 0
        %v721 = vunpack.c.l.b16 %v701
        %v722 = vunpack.c.l.b16 %v702
        %v723 = vunpack.c.l.b16 %v703
        %v724 = vunpack.c.l.b16 %v704
        %v725 = vunpack.c.l.b16 %v705
        %v726 = vunpack.c.l.b16 %v706
        %v727 = vunpack.c.l.b16 %v707
        %v728 = vunpack.c.l.b16 %v708
        %v729 = vpack.c.b16 %v722, %v721
        %v730 = vpack.c.b16 %v724, %v723
        %v731 = vpack.c.b16 %v726, %v725
        %v732 = vpack.c.b16 %v728, %v727
        %vm737 = vcmask 523264
        %v739 = vsel %vm737, %v693, 0
        %v742 = vsel %vm737, %v694, 0
        %v745 = vsel %vm737, %v695, 0
        %v748 = vsel %vm737, %v696, 0
        %v751 = vsel %vm737, %v697, 0
        %v754 = vsel %vm737, %v698, 0
        %v757 = vsel %vm737, %v699, 0
        %v760 = vsel %vm737, %v700, 0
        %762 = vmatpush.bf16.msra.mxu0 0
        %763 = vmatpush.bf16.msra.mxu0 0
        %764 = vmatpush.bf16.msra.mxu0 0
        %765 = vmatpush.bf16.msra.mxu0 0
        %766 = vmatpush.bf16.msra.mxu0 %v732
        %767 = vmatpush.bf16.msra.mxu0 %v731
        %768 = vmatpush.bf16.msra.mxu0 %v730
        %769 = vmatpush.bf16.msra.mxu0 %v729
        %770 = vmatmul.bf16.gmra.mxu0 %v739
        %v771 = vpop.f32.mrf.mxu0
        %v772 = vadd.f32 %v711, %v771
        %v773 = vpop.f32.mrf.mxu0
        %v774 = vadd.f32 %v711, %v773
        %775 = vmatmul.bf16.gmra.mxu0 %v742
        %v776 = vpop.f32.mrf.mxu0
        %v777 = vadd.f32 %v711, %v776
        %v778 = vpop.f32.mrf.mxu0
        %v779 = vadd.f32 %v711, %v778
        %780 = vmatmul.bf16.gmra.mxu0 %v745
        %v781 = vpop.f32.mrf.mxu0
        %v782 = vadd.f32 %v711, %v781
        %v783 = vpop.f32.mrf.mxu0
        %v784 = vadd.f32 %v711, %v783
        %785 = vmatmul.bf16.gmra.mxu0 %v748
        %v786 = vpop.f32.mrf.mxu0
        %v787 = vadd.f32 %v711, %v786
        %v788 = vpop.f32.mrf.mxu0
        %v789 = vadd.f32 %v711, %v788
        %790 = vmatmul.bf16.gmra.mxu0 %v751
        %v791 = vpop.f32.mrf.mxu0
        %v792 = vadd.f32 %v711, %v791
        %v793 = vpop.f32.mrf.mxu0
        %v794 = vadd.f32 %v711, %v793
        %795 = vmatmul.bf16.gmra.mxu0 %v754
        %v796 = vpop.f32.mrf.mxu0
        %v797 = vadd.f32 %v711, %v796
        %v798 = vpop.f32.mrf.mxu0
        %v799 = vadd.f32 %v711, %v798
        %800 = vmatmul.bf16.gmra.mxu0 %v757
        %v801 = vpop.f32.mrf.mxu0
        %v802 = vadd.f32 %v711, %v801
        %v803 = vpop.f32.mrf.mxu0
        %v804 = vadd.f32 %v711, %v803
        %805 = vmatmul.bf16.gmra.mxu0 %v760
        %v806 = vpop.f32.mrf.mxu0
        %v807 = vadd.f32 %v711, %v806
        %v808 = vpop.f32.mrf.mxu0
        %v809 = vadd.f32 %v711, %v808
        %810 = vdwg.mxu0
        %v811 = vmax.f32 %v772, 0.0
        %v812 = vmax.f32 %v774, 0.0
        %v813 = vmax.f32 %v777, 0.0
        %v814 = vmax.f32 %v779, 0.0
        %v815 = vmax.f32 %v782, 0.0
        %v816 = vmax.f32 %v784, 0.0
        %v817 = vmax.f32 %v787, 0.0
        %v818 = vmax.f32 %v789, 0.0
        %v819 = vmax.f32 %v792, 0.0
        %v820 = vmax.f32 %v794, 0.0
        %v821 = vmax.f32 %v797, 0.0
        %v822 = vmax.f32 %v799, 0.0
        %v823 = vmax.f32 %v802, 0.0
        %v824 = vmax.f32 %v804, 0.0
        %v825 = vmax.f32 %v807, 0.0
        %v826 = vmax.f32 %v809, 0.0
        %v827 = vpack.c.bf16 %v812, %v811
        %v828 = vpack.c.bf16 %v814, %v813
        %v829 = vpack.c.bf16 %v816, %v815
        %v830 = vpack.c.bf16 %v818, %v817
        %v831 = vpack.c.bf16 %v820, %v819
        %v832 = vpack.c.bf16 %v822, %v821
        %v833 = vpack.c.bf16 %v824, %v823
        %v834 = vpack.c.bf16 %v826, %v825
        %v835 = vld [vmem:[#allocation6] sm:$0xff]
        %v836 = vld [vmem:[#allocation6 + $0x8] sm:$0xff]
        %v837 = vld [vmem:[#allocation6 + $0x10] sm:$0xff]
        %v838 = vld [vmem:[#allocation6 + $0x18] sm:$0xff]
        %v839 = vld [vmem:[#allocation6 + $0x20] sm:$0xff]
        %v840 = vld [vmem:[#allocation6 + $0x28] sm:$0xff]
        %v841 = vld [vmem:[#allocation6 + $0x30] sm:$0xff]
        %v842 = vld [vmem:[#allocation6 + $0x38] sm:$0xff]
        %v843 = vld [vmem:[#allocation6 + $0x40] sm:$0xff]
        %v844 = vld [vmem:[#allocation6 + $0x48] sm:$0xff]
        %v845 = vld [vmem:[#allocation6 + $0x50] sm:$0xff]
        %v846 = vld [vmem:[#allocation6 + $0x58] sm:$0xff]
        %v847 = vld [vmem:[#allocation6 + $0x60] sm:$0xff]
        %v848 = vld [vmem:[#allocation6 + $0x68] sm:$0xff]
        %v849 = vld [vmem:[#allocation6 + $0x70] sm:$0xff]
        %v850 = vld [vmem:[#allocation6 + $0x78] sm:$0xff]
        %v851 = vld [vmem:[#allocation6 + $0x80] sm:$0xff]
        %v852 = vld [vmem:[#allocation6 + $0x88] sm:$0xff]
        %v853 = vld [vmem:[#allocation6 + $0x90] sm:$0xff]
        %v854 = vld [vmem:[#allocation6 + $0x98] sm:$0xff]
        %v855 = vld [vmem:[#allocation6 + $0xa0] sm:$0xff]
        %v856 = vld [vmem:[#allocation6 + $0xa8] sm:$0xff]
        %v857 = vld [vmem:[#allocation6 + $0xb0] sm:$0xff]
        %v858 = vld [vmem:[#allocation6 + $0xb8] sm:$0xff]
        %v859 = vld [vmem:[#allocation6 + $0xc0] sm:$0xff]
        %v860 = vld [vmem:[#allocation6 + $0xc8] sm:$0xff]
        %v861 = vld [vmem:[#allocation6 + $0xd0] sm:$0xff]
        %v862 = vld [vmem:[#allocation6 + $0xd8] sm:$0xff]
        %v863 = vld [vmem:[#allocation6 + $0xe0] sm:$0xff]
        %v864 = vld [vmem:[#allocation6 + $0xe8] sm:$0xff]
        %v865 = vld [vmem:[#allocation6 + $0xf0] sm:$0xff]
        %v866 = vld [vmem:[#allocation6 + $0xf8] sm:$0xff]
        %v867 = vld [vmem:[%s6] sm:$0xf]
        %v869 = vperm.slane %v867, 0
        %v870 = vperm.slane %v867, 1
        %v871 = vperm.slane %v867, 2
        %v872 = vperm.slane %v867, 3
        %v909 = vunpack.c.l.b16 %v835
        %v910 = vunpack.c.h.b16 %v835
        %v911 = vunpack.c.l.b16 %v836
        %v912 = vunpack.c.h.b16 %v836
        %v913 = vunpack.c.l.b16 %v837
        %v914 = vunpack.c.h.b16 %v837
        %v915 = vunpack.c.l.b16 %v838
        %v916 = vunpack.c.h.b16 %v838
        %v917 = vunpack.c.l.b16 %v839
        %v918 = vunpack.c.h.b16 %v839
        %v919 = vunpack.c.l.b16 %v840
        %v920 = vunpack.c.h.b16 %v840
        %v921 = vunpack.c.l.b16 %v841
        %v922 = vunpack.c.h.b16 %v841
        %v923 = vunpack.c.l.b16 %v842
        %v924 = vunpack.c.h.b16 %v842
        %v925 = vunpack.c.l.b16 %v843
        %v926 = vunpack.c.h.b16 %v843
        %v927 = vunpack.c.l.b16 %v844
        %v928 = vunpack.c.h.b16 %v844
        %v929 = vunpack.c.l.b16 %v845
        %v930 = vunpack.c.h.b16 %v845
        %v931 = vunpack.c.l.b16 %v846
        %v932 = vunpack.c.h.b16 %v846
        %v933 = vunpack.c.l.b16 %v847
        %v934 = vunpack.c.h.b16 %v847
        %v935 = vunpack.c.l.b16 %v848
        %v936 = vunpack.c.h.b16 %v848
        %v937 = vunpack.c.l.b16 %v849
        %v938 = vunpack.c.h.b16 %v849
        %v939 = vunpack.c.l.b16 %v850
        %v940 = vunpack.c.h.b16 %v850
        %v941 = vunpack.c.l.b16 %v851
        %v942 = vunpack.c.h.b16 %v851
        %v943 = vunpack.c.l.b16 %v852
        %v944 = vunpack.c.h.b16 %v852
        %v945 = vunpack.c.l.b16 %v853
        %v946 = vunpack.c.h.b16 %v853
        %v947 = vunpack.c.l.b16 %v854
        %v948 = vunpack.c.h.b16 %v854
        %v949 = vunpack.c.l.b16 %v855
        %v950 = vunpack.c.h.b16 %v855
        %v951 = vunpack.c.l.b16 %v856
        %v952 = vunpack.c.h.b16 %v856
        %v953 = vunpack.c.l.b16 %v857
        %v954 = vunpack.c.h.b16 %v857
        %v955 = vunpack.c.l.b16 %v858
        %v956 = vunpack.c.h.b16 %v858
        %v957 = vunpack.c.l.b16 %v859
        %v958 = vunpack.c.h.b16 %v859
        %v959 = vunpack.c.l.b16 %v860
        %v960 = vunpack.c.h.b16 %v860
        %v961 = vunpack.c.l.b16 %v861
        %v962 = vunpack.c.h.b16 %v861
        %v963 = vunpack.c.l.b16 %v862
        %v964 = vunpack.c.h.b16 %v862
        %v965 = vunpack.c.l.b16 %v863
        %v966 = vunpack.c.h.b16 %v863
        %v967 = vunpack.c.l.b16 %v864
        %v968 = vunpack.c.h.b16 %v864
        %v969 = vunpack.c.l.b16 %v865
        %v970 = vunpack.c.h.b16 %v865
        %v971 = vunpack.c.l.b16 %v866
        %v972 = vunpack.c.h.b16 %v866
        %v973 = vpack.c.b16 %v913, %v909
        %v974 = vpack.c.b16 %v914, %v910
        %v975 = vpack.c.b16 %v915, %v911
        %v976 = vpack.c.b16 %v916, %v912
        %v977 = vpack.c.b16 %v921, %v917
        %v978 = vpack.c.b16 %v922, %v918
        %v979 = vpack.c.b16 %v923, %v919
        %v980 = vpack.c.b16 %v924, %v920
        %v981 = vpack.c.b16 %v929, %v925
        %v982 = vpack.c.b16 %v930, %v926
        %v983 = vpack.c.b16 %v931, %v927
        %v984 = vpack.c.b16 %v932, %v928
        %v985 = vpack.c.b16 %v937, %v933
        %v986 = vpack.c.b16 %v938, %v934
        %v987 = vpack.c.b16 %v939, %v935
        %v988 = vpack.c.b16 %v940, %v936
        %v989 = vpack.c.b16 %v945, %v941
        %v990 = vpack.c.b16 %v946, %v942
        %v991 = vpack.c.b16 %v947, %v943
        %v992 = vpack.c.b16 %v948, %v944
        %v993 = vpack.c.b16 %v953, %v949
        %v994 = vpack.c.b16 %v954, %v950
        %v995 = vpack.c.b16 %v955, %v951
        %v996 = vpack.c.b16 %v956, %v952
        %v997 = vpack.c.b16 %v961, %v957
        %v998 = vpack.c.b16 %v962, %v958
        %v999 = vpack.c.b16 %v963, %v959
        %v1000 = vpack.c.b16 %v964, %v960
        %v1001 = vpack.c.b16 %v969, %v965
        %v1002 = vpack.c.b16 %v970, %v966
        %v1003 = vpack.c.b16 %v971, %v967
        %v1004 = vpack.c.b16 %v972, %v968
        %1037 = vmatpush.bf16.msra.mxu0 %v1001
        %1038 = vmatpush.bf16.msra.mxu0 %v997
        %1039 = vmatpush.bf16.msra.mxu0 %v993
        %1040 = vmatpush.bf16.msra.mxu0 %v989
        %1041 = vmatpush.bf16.msra.mxu0 %v985
        %1042 = vmatpush.bf16.msra.mxu0 %v981
        %1043 = vmatpush.bf16.msra.mxu0 %v977
        %1044 = vmatpush.bf16.msra.mxu0 %v973
        %1045 = vmatmul.bf16.gmra.mxu0 %v827
        %v1046 = vpop.f32.mrf.mxu0
        %v1047 = vadd.f32 %v869, %v1046
        %v1048 = vpop.f32.mrf.mxu0
        %v1049 = vadd.f32 %v869, %v1048
        %1050 = vmatmul.bf16.gmra.mxu0 %v828
        %v1051 = vpop.f32.mrf.mxu0
        %v1052 = vadd.f32 %v869, %v1051
        %v1053 = vpop.f32.mrf.mxu0
        %v1054 = vadd.f32 %v869, %v1053
        %1055 = vmatmul.bf16.gmra.mxu0 %v829
        %v1056 = vpop.f32.mrf.mxu0
        %v1057 = vadd.f32 %v869, %v1056
        %v1058 = vpop.f32.mrf.mxu0
        %v1059 = vadd.f32 %v869, %v1058
        %1060 = vmatmul.bf16.gmra.mxu0 %v830
        %v1061 = vpop.f32.mrf.mxu0
        %v1062 = vadd.f32 %v869, %v1061
        %v1063 = vpop.f32.mrf.mxu0
        %v1064 = vadd.f32 %v869, %v1063
        %1065 = vmatmul.bf16.gmra.mxu0 %v831
        %v1066 = vpop.f32.mrf.mxu0
        %v1067 = vadd.f32 %v869, %v1066
        %v1068 = vpop.f32.mrf.mxu0
        %v1069 = vadd.f32 %v869, %v1068
        %1070 = vmatmul.bf16.gmra.mxu0 %v832
        %v1071 = vpop.f32.mrf.mxu0
        %v1072 = vadd.f32 %v869, %v1071
        %v1073 = vpop.f32.mrf.mxu0
        %v1074 = vadd.f32 %v869, %v1073
        %1075 = vmatmul.bf16.gmra.mxu0 %v833
        %v1076 = vpop.f32.mrf.mxu0
        %v1077 = vadd.f32 %v869, %v1076
        %v1078 = vpop.f32.mrf.mxu0
        %v1079 = vadd.f32 %v869, %v1078
        %1080 = vmatmul.bf16.gmra.mxu0 %v834
        %v1081 = vpop.f32.mrf.mxu0
        %v1082 = vadd.f32 %v869, %v1081
        %v1083 = vpop.f32.mrf.mxu0
        %v1084 = vadd.f32 %v869, %v1083
        %1085 = vdwg.mxu0
        %1086 = vmatpush.bf16.msra.mxu0 %v1002
        %1087 = vmatpush.bf16.msra.mxu0 %v998
        %1088 = vmatpush.bf16.msra.mxu0 %v994
        %1089 = vmatpush.bf16.msra.mxu0 %v990
        %1090 = vmatpush.bf16.msra.mxu0 %v986
        %1091 = vmatpush.bf16.msra.mxu0 %v982
        %1092 = vmatpush.bf16.msra.mxu0 %v978
        %1093 = vmatpush.bf16.msra.mxu0 %v974
        %1094 = vmatmul.bf16.gmra.mxu0 %v827
        %v1095 = vpop.f32.mrf.mxu0
        %v1096 = vadd.f32 %v870, %v1095
        %v1097 = vpop.f32.mrf.mxu0
        %v1098 = vadd.f32 %v870, %v1097
        %1099 = vmatmul.bf16.gmra.mxu0 %v828
        %v1100 = vpop.f32.mrf.mxu0
        %v1101 = vadd.f32 %v870, %v1100
        %v1102 = vpop.f32.mrf.mxu0
        %v1103 = vadd.f32 %v870, %v1102
        %1104 = vmatmul.bf16.gmra.mxu0 %v829
        %v1105 = vpop.f32.mrf.mxu0
        %v1106 = vadd.f32 %v870, %v1105
        %v1107 = vpop.f32.mrf.mxu0
        %v1108 = vadd.f32 %v870, %v1107
        %1109 = vmatmul.bf16.gmra.mxu0 %v830
        %v1110 = vpop.f32.mrf.mxu0
        %v1111 = vadd.f32 %v870, %v1110
        %v1112 = vpop.f32.mrf.mxu0
        %v1113 = vadd.f32 %v870, %v1112
        %1114 = vmatmul.bf16.gmra.mxu0 %v831
        %v1115 = vpop.f32.mrf.mxu0
        %v1116 = vadd.f32 %v870, %v1115
        %v1117 = vpop.f32.mrf.mxu0
        %v1118 = vadd.f32 %v870, %v1117
        %1119 = vmatmul.bf16.gmra.mxu0 %v832
        %v1120 = vpop.f32.mrf.mxu0
        %v1121 = vadd.f32 %v870, %v1120
        %v1122 = vpop.f32.mrf.mxu0
        %v1123 = vadd.f32 %v870, %v1122
        %1124 = vmatmul.bf16.gmra.mxu0 %v833
        %v1125 = vpop.f32.mrf.mxu0
        %v1126 = vadd.f32 %v870, %v1125
        %v1127 = vpop.f32.mrf.mxu0
        %v1128 = vadd.f32 %v870, %v1127
        %1129 = vmatmul.bf16.gmra.mxu0 %v834
        %v1130 = vpop.f32.mrf.mxu0
        %v1131 = vadd.f32 %v870, %v1130
        %v1132 = vpop.f32.mrf.mxu0
        %v1133 = vadd.f32 %v870, %v1132
        %1134 = vdwg.mxu0
        %1135 = vmatpush.bf16.msra.mxu0 %v1003
        %1136 = vmatpush.bf16.msra.mxu0 %v999
        %1137 = vmatpush.bf16.msra.mxu0 %v995
        %1138 = vmatpush.bf16.msra.mxu0 %v991
        %1139 = vmatpush.bf16.msra.mxu0 %v987
        %1140 = vmatpush.bf16.msra.mxu0 %v983
        %1141 = vmatpush.bf16.msra.mxu0 %v979
        %1142 = vmatpush.bf16.msra.mxu0 %v975
        %1143 = vmatmul.bf16.gmra.mxu0 %v827
        %v1144 = vpop.f32.mrf.mxu0
        %v1145 = vadd.f32 %v871, %v1144
        %v1146 = vpop.f32.mrf.mxu0
        %v1147 = vadd.f32 %v871, %v1146
        %1148 = vmatmul.bf16.gmra.mxu0 %v828
        %v1149 = vpop.f32.mrf.mxu0
        %v1150 = vadd.f32 %v871, %v1149
        %v1151 = vpop.f32.mrf.mxu0
        %v1152 = vadd.f32 %v871, %v1151
        %1153 = vmatmul.bf16.gmra.mxu0 %v829
        %v1154 = vpop.f32.mrf.mxu0
        %v1155 = vadd.f32 %v871, %v1154
        %v1156 = vpop.f32.mrf.mxu0
        %v1157 = vadd.f32 %v871, %v1156
        %1158 = vmatmul.bf16.gmra.mxu0 %v830
        %v1159 = vpop.f32.mrf.mxu0
        %v1160 = vadd.f32 %v871, %v1159
        %v1161 = vpop.f32.mrf.mxu0
        %v1162 = vadd.f32 %v871, %v1161
        %1163 = vmatmul.bf16.gmra.mxu0 %v831
        %v1164 = vpop.f32.mrf.mxu0
        %v1165 = vadd.f32 %v871, %v1164
        %v1166 = vpop.f32.mrf.mxu0
        %v1167 = vadd.f32 %v871, %v1166
        %1168 = vmatmul.bf16.gmra.mxu0 %v832
        %v1169 = vpop.f32.mrf.mxu0
        %v1170 = vadd.f32 %v871, %v1169
        %v1171 = vpop.f32.mrf.mxu0
        %v1172 = vadd.f32 %v871, %v1171
        %1173 = vmatmul.bf16.gmra.mxu0 %v833
        %v1174 = vpop.f32.mrf.mxu0
        %v1175 = vadd.f32 %v871, %v1174
        %v1176 = vpop.f32.mrf.mxu0
        %v1177 = vadd.f32 %v871, %v1176
        %1178 = vmatmul.bf16.gmra.mxu0 %v834
        %v1179 = vpop.f32.mrf.mxu0
        %v1180 = vadd.f32 %v871, %v1179
        %v1181 = vpop.f32.mrf.mxu0
        %v1182 = vadd.f32 %v871, %v1181
        %1183 = vdwg.mxu0
        %1184 = vmatpush.bf16.msra.mxu0 %v1004
        %1185 = vmatpush.bf16.msra.mxu0 %v1000
        %1186 = vmatpush.bf16.msra.mxu0 %v996
        %1187 = vmatpush.bf16.msra.mxu0 %v992
        %1188 = vmatpush.bf16.msra.mxu0 %v988
        %1189 = vmatpush.bf16.msra.mxu0 %v984
        %1190 = vmatpush.bf16.msra.mxu0 %v980
        %1191 = vmatpush.bf16.msra.mxu0 %v976
        %1192 = vmatmul.bf16.gmra.mxu0 %v827
        %v1193 = vpop.f32.mrf.mxu0
        %v1194 = vadd.f32 %v872, %v1193
        %v1195 = vpop.f32.mrf.mxu0
        %v1196 = vadd.f32 %v872, %v1195
        %1197 = vmatmul.bf16.gmra.mxu0 %v828
        %v1198 = vpop.f32.mrf.mxu0
        %v1199 = vadd.f32 %v872, %v1198
        %v1200 = vpop.f32.mrf.mxu0
        %v1201 = vadd.f32 %v872, %v1200
        %1202 = vmatmul.bf16.gmra.mxu0 %v829
        %v1203 = vpop.f32.mrf.mxu0
        %v1204 = vadd.f32 %v872, %v1203
        %v1205 = vpop.f32.mrf.mxu0
        %v1206 = vadd.f32 %v872, %v1205
        %1207 = vmatmul.bf16.gmra.mxu0 %v830
        %v1208 = vpop.f32.mrf.mxu0
        %v1209 = vadd.f32 %v872, %v1208
        %v1210 = vpop.f32.mrf.mxu0
        %v1211 = vadd.f32 %v872, %v1210
        %1212 = vmatmul.bf16.gmra.mxu0 %v831
        %v1213 = vpop.f32.mrf.mxu0
        %v1214 = vadd.f32 %v872, %v1213
        %v1215 = vpop.f32.mrf.mxu0
        %v1216 = vadd.f32 %v872, %v1215
        %1217 = vmatmul.bf16.gmra.mxu0 %v832
        %v1218 = vpop.f32.mrf.mxu0
        %v1219 = vadd.f32 %v872, %v1218
        %v1220 = vpop.f32.mrf.mxu0
        %v1221 = vadd.f32 %v872, %v1220
        %1222 = vmatmul.bf16.gmra.mxu0 %v833
        %v1223 = vpop.f32.mrf.mxu0
        %v1224 = vadd.f32 %v872, %v1223
        %v1225 = vpop.f32.mrf.mxu0
        %v1226 = vadd.f32 %v872, %v1225
        %1227 = vmatmul.bf16.gmra.mxu0 %v834
        %v1228 = vpop.f32.mrf.mxu0
        %v1229 = vadd.f32 %v872, %v1228
        %v1230 = vpop.f32.mrf.mxu0
        %v1231 = vadd.f32 %v872, %v1230
        %1232 = vdwg.mxu0
        %v1233 = vmax.f32 %v1047, 0.0
        %v1234 = vmax.f32 %v1096, 0.0
        %v1235 = vmax.f32 %v1145, 0.0
        %v1236 = vmax.f32 %v1194, 0.0
        %v1237 = vmax.f32 %v1049, 0.0
        %v1238 = vmax.f32 %v1098, 0.0
        %v1239 = vmax.f32 %v1147, 0.0
        %v1240 = vmax.f32 %v1196, 0.0
        %v1241 = vmax.f32 %v1052, 0.0
        %v1242 = vmax.f32 %v1101, 0.0
        %v1243 = vmax.f32 %v1150, 0.0
        %v1244 = vmax.f32 %v1199, 0.0
        %v1245 = vmax.f32 %v1054, 0.0
        %v1246 = vmax.f32 %v1103, 0.0
        %v1247 = vmax.f32 %v1152, 0.0
        %v1248 = vmax.f32 %v1201, 0.0
        %v1249 = vmax.f32 %v1057, 0.0
        %v1250 = vmax.f32 %v1106, 0.0
        %v1251 = vmax.f32 %v1155, 0.0
        %v1252 = vmax.f32 %v1204, 0.0
        %v1253 = vmax.f32 %v1059, 0.0
        %v1254 = vmax.f32 %v1108, 0.0
        %v1255 = vmax.f32 %v1157, 0.0
        %v1256 = vmax.f32 %v1206, 0.0
        %v1257 = vmax.f32 %v1062, 0.0
        %v1258 = vmax.f32 %v1111, 0.0
        %v1259 = vmax.f32 %v1160, 0.0
        %v1260 = vmax.f32 %v1209, 0.0
        %v1261 = vmax.f32 %v1064, 0.0
        %v1262 = vmax.f32 %v1113, 0.0
        %v1263 = vmax.f32 %v1162, 0.0
        %v1264 = vmax.f32 %v1211, 0.0
        %v1265 = vmax.f32 %v1067, 0.0
        %v1266 = vmax.f32 %v1116, 0.0
        %v1267 = vmax.f32 %v1165, 0.0
        %v1268 = vmax.f32 %v1214, 0.0
        %v1269 = vmax.f32 %v1069, 0.0
        %v1270 = vmax.f32 %v1118, 0.0
        %v1271 = vmax.f32 %v1167, 0.0
        %v1272 = vmax.f32 %v1216, 0.0
        %v1273 = vmax.f32 %v1072, 0.0
        %v1274 = vmax.f32 %v1121, 0.0
        %v1275 = vmax.f32 %v1170, 0.0
        %v1276 = vmax.f32 %v1219, 0.0
        %v1277 = vmax.f32 %v1074, 0.0
        %v1278 = vmax.f32 %v1123, 0.0
        %v1279 = vmax.f32 %v1172, 0.0
        %v1280 = vmax.f32 %v1221, 0.0
        %v1281 = vmax.f32 %v1077, 0.0
        %v1282 = vmax.f32 %v1126, 0.0
        %v1283 = vmax.f32 %v1175, 0.0
        %v1284 = vmax.f32 %v1224, 0.0
        %v1285 = vmax.f32 %v1079, 0.0
        %v1286 = vmax.f32 %v1128, 0.0
        %v1287 = vmax.f32 %v1177, 0.0
        %v1288 = vmax.f32 %v1226, 0.0
        %v1289 = vmax.f32 %v1082, 0.0
        %v1290 = vmax.f32 %v1131, 0.0
        %v1291 = vmax.f32 %v1180, 0.0
        %v1292 = vmax.f32 %v1229, 0.0
        %v1293 = vmax.f32 %v1084, 0.0
        %v1294 = vmax.f32 %v1133, 0.0
        %v1295 = vmax.f32 %v1182, 0.0
        %v1296 = vmax.f32 %v1231, 0.0
        %s1297 = smul.u32 %s35, 128
        %v1298 = vlaneseq
        %v1299 = vshrl.u32 %v1298, 7
        %v1300 = vadd.s32 %v1299, 8
        %v1301 = vadd.s32 %v1299, 16
        %v1302 = vadd.s32 %v1299, 24
        %v1303 = vadd.s32 %v1299, 32
        %v1304 = vadd.s32 %v1299, 40
        %v1305 = vadd.s32 %v1299, 48
        %v1306 = vadd.s32 %v1299, 56
        %v1307 = vadd.s32 %v1299, 64
        %v1308 = vadd.s32 %v1299, 72
        %v1309 = vadd.s32 %v1299, 80
        %v1310 = vadd.s32 %v1299, 88
        %v1311 = vadd.s32 %v1299, 96
        %v1312 = vadd.s32 %v1299, 104
        %v1313 = vadd.s32 %v1299, 112
        %v1314 = vadd.s32 %v1299, 120
        %v1315 = vstv %s1297
        %v1316 = vadd.s32 %v1315, %v1299
        %v1317 = vadd.s32 %v1315, %v1300
        %v1318 = vadd.s32 %v1315, %v1301
        %v1319 = vadd.s32 %v1315, %v1302
        %v1320 = vadd.s32 %v1315, %v1303
        %v1321 = vadd.s32 %v1315, %v1304
        %v1322 = vadd.s32 %v1315, %v1305
        %v1323 = vadd.s32 %v1315, %v1306
        %v1324 = vadd.s32 %v1315, %v1307
        %v1325 = vadd.s32 %v1315, %v1308
        %v1326 = vadd.s32 %v1315, %v1309
        %v1327 = vadd.s32 %v1315, %v1310
        %v1328 = vadd.s32 %v1315, %v1311
        %v1329 = vadd.s32 %v1315, %v1312
        %v1330 = vadd.s32 %v1315, %v1313
        %v1331 = vadd.s32 %v1315, %v1314
        %vm1332 = vcmp.lt.s32.totalorder %v1316, 64
        %vm1333 = vcmp.lt.s32.totalorder %v1317, 64
        %vm1334 = vcmp.lt.s32.totalorder %v1318, 64
        %vm1335 = vcmp.lt.s32.totalorder %v1319, 64
        %vm1336 = vcmp.lt.s32.totalorder %v1320, 64
        %vm1337 = vcmp.lt.s32.totalorder %v1321, 64
        %vm1338 = vcmp.lt.s32.totalorder %v1322, 64
        %vm1339 = vcmp.lt.s32.totalorder %v1323, 64
        %vm1340 = vcmp.lt.s32.totalorder %v1324, 64
        %vm1341 = vcmp.lt.s32.totalorder %v1325, 64
        %vm1342 = vcmp.lt.s32.totalorder %v1326, 64
        %vm1343 = vcmp.lt.s32.totalorder %v1327, 64
        %vm1344 = vcmp.lt.s32.totalorder %v1328, 64
        %vm1345 = vcmp.lt.s32.totalorder %v1329, 64
        %vm1346 = vcmp.lt.s32.totalorder %v1330, 64
        %vm1347 = vcmp.lt.s32.totalorder %v1331, 64
        %v1348 = vsel %vm1332, 1, 0
        %v1349 = vsel %vm1333, 1, 0
        %v1350 = vsel %vm1334, 1, 0
        %v1351 = vsel %vm1335, 1, 0
        %v1352 = vsel %vm1336, 1, 0
        %v1353 = vsel %vm1337, 1, 0
        %v1354 = vsel %vm1338, 1, 0
        %v1355 = vsel %vm1339, 1, 0
        %v1356 = vsel %vm1340, 1, 0
        %v1357 = vsel %vm1341, 1, 0
        %v1358 = vsel %vm1342, 1, 0
        %v1359 = vsel %vm1343, 1, 0
        %v1360 = vsel %vm1344, 1, 0
        %v1361 = vsel %vm1345, 1, 0
        %v1362 = vsel %vm1346, 1, 0
        %v1363 = vsel %vm1347, 1, 0
        %vm1364 = vcmp.eq.s32.totalorder %v1348, 1
        %vm1365 = vcmp.eq.s32.totalorder %v1349, 1
        %vm1366 = vcmp.eq.s32.totalorder %v1350, 1
        %vm1367 = vcmp.eq.s32.totalorder %v1351, 1
        %vm1368 = vcmp.eq.s32.totalorder %v1352, 1
        %vm1369 = vcmp.eq.s32.totalorder %v1353, 1
        %vm1370 = vcmp.eq.s32.totalorder %v1354, 1
        %vm1371 = vcmp.eq.s32.totalorder %v1355, 1
        %vm1372 = vcmp.eq.s32.totalorder %v1356, 1
        %vm1373 = vcmp.eq.s32.totalorder %v1357, 1
        %vm1374 = vcmp.eq.s32.totalorder %v1358, 1
        %vm1375 = vcmp.eq.s32.totalorder %v1359, 1
        %vm1376 = vcmp.eq.s32.totalorder %v1360, 1
        %vm1377 = vcmp.eq.s32.totalorder %v1361, 1
        %vm1378 = vcmp.eq.s32.totalorder %v1362, 1
        %vm1379 = vcmp.eq.s32.totalorder %v1363, 1
        %v1380 = vsel %vm1364, %v1233, -inf
        %v1381 = vsel %vm1364, %v1234, -inf
        %v1382 = vsel %vm1364, %v1235, -inf
        %v1383 = vsel %vm1364, %v1236, -inf
        %v1384 = vsel %vm1365, %v1237, -inf
        %v1385 = vsel %vm1365, %v1238, -inf
        %v1386 = vsel %vm1365, %v1239, -inf
        %v1387 = vsel %vm1365, %v1240, -inf
        %v1388 = vsel %vm1366, %v1241, -inf
        %v1389 = vsel %vm1366, %v1242, -inf
        %v1390 = vsel %vm1366, %v1243, -inf
        %v1391 = vsel %vm1366, %v1244, -inf
        %v1392 = vsel %vm1367, %v1245, -inf
        %v1393 = vsel %vm1367, %v1246, -inf
        %v1394 = vsel %vm1367, %v1247, -inf
        %v1395 = vsel %vm1367, %v1248, -inf
        %v1396 = vsel %vm1368, %v1249, -inf
        %v1397 = vsel %vm1368, %v1250, -inf
        %v1398 = vsel %vm1368, %v1251, -inf
        %v1399 = vsel %vm1368, %v1252, -inf
        %v1400 = vsel %vm1369, %v1253, -inf
        %v1401 = vsel %vm1369, %v1254, -inf
        %v1402 = vsel %vm1369, %v1255, -inf
        %v1403 = vsel %vm1369, %v1256, -inf
        %v1404 = vsel %vm1370, %v1257, -inf
        %v1405 = vsel %vm1370, %v1258, -inf
        %v1406 = vsel %vm1370, %v1259, -inf
        %v1407 = vsel %vm1370, %v1260, -inf
        %v1408 = vsel %vm1371, %v1261, -inf
        %v1409 = vsel %vm1371, %v1262, -inf
        %v1410 = vsel %vm1371, %v1263, -inf
        %v1411 = vsel %vm1371, %v1264, -inf
        %v1412 = vsel %vm1372, %v1265, -inf
        %v1413 = vsel %vm1372, %v1266, -inf
        %v1414 = vsel %vm1372, %v1267, -inf
        %v1415 = vsel %vm1372, %v1268, -inf
        %v1416 = vsel %vm1373, %v1269, -inf
        %v1417 = vsel %vm1373, %v1270, -inf
        %v1418 = vsel %vm1373, %v1271, -inf
        %v1419 = vsel %vm1373, %v1272, -inf
        %v1420 = vsel %vm1374, %v1273, -inf
        %v1421 = vsel %vm1374, %v1274, -inf
        %v1422 = vsel %vm1374, %v1275, -inf
        %v1423 = vsel %vm1374, %v1276, -inf
        %v1424 = vsel %vm1375, %v1277, -inf
        %v1425 = vsel %vm1375, %v1278, -inf
        %v1426 = vsel %vm1375, %v1279, -inf
        %v1427 = vsel %vm1375, %v1280, -inf
        %v1428 = vsel %vm1376, %v1281, -inf
        %v1429 = vsel %vm1376, %v1282, -inf
        %v1430 = vsel %vm1376, %v1283, -inf
        %v1431 = vsel %vm1376, %v1284, -inf
        %v1432 = vsel %vm1377, %v1285, -inf
        %v1433 = vsel %vm1377, %v1286, -inf
        %v1434 = vsel %vm1377, %v1287, -inf
        %v1435 = vsel %vm1377, %v1288, -inf
        %v1436 = vsel %vm1378, %v1289, -inf
        %v1437 = vsel %vm1378, %v1290, -inf
        %v1438 = vsel %vm1378, %v1291, -inf
        %v1439 = vsel %vm1378, %v1292, -inf
        %v1440 = vsel %vm1379, %v1293, -inf
        %v1441 = vsel %vm1379, %v1294, -inf
        %v1442 = vsel %vm1379, %v1295, -inf
        %v1443 = vsel %vm1379, %v1296, -inf
        %v1444 = vmax.f32 %v1380, %v1384
        %v1445 = vmax.f32 %v1444, %v1388
        %v1446 = vmax.f32 %v1445, %v1392
        %v1447 = vmax.f32 %v1446, %v1396
        %v1448 = vmax.f32 %v1447, %v1400
        %v1449 = vmax.f32 %v1448, %v1404
        %v1450 = vmax.f32 %v1449, %v1408
        %v1451 = vmax.f32 %v1450, %v1412
        %v1452 = vmax.f32 %v1451, %v1416
        %v1453 = vmax.f32 %v1452, %v1420
        %v1454 = vmax.f32 %v1453, %v1424
        %v1455 = vmax.f32 %v1454, %v1428
        %v1456 = vmax.f32 %v1455, %v1432
        %v1457 = vmax.f32 %v1456, %v1436
        %v1458 = vmax.f32 %v1457, %v1440
        %v1459 = vrot.slane %v1458, 4
        %v1460 = vmax.f32 %v1458, %v1459
        %v1461 = vrot.slane %v1460, 2
        %v1462 = vmax.f32 %v1460, %v1461
        %v1463 = vrot.slane %v1462, 1
        %v1464 = vmax.f32 %v1462, %v1463
        %v1465 = vmax.f32 %v1381, %v1385
        %v1466 = vmax.f32 %v1465, %v1389
        %v1467 = vmax.f32 %v1466, %v1393
        %v1468 = vmax.f32 %v1467, %v1397
        %v1469 = vmax.f32 %v1468, %v1401
        %v1470 = vmax.f32 %v1469, %v1405
        %v1471 = vmax.f32 %v1470, %v1409
        %v1472 = vmax.f32 %v1471, %v1413
        %v1473 = vmax.f32 %v1472, %v1417
        %v1474 = vmax.f32 %v1473, %v1421
        %v1475 = vmax.f32 %v1474, %v1425
        %v1476 = vmax.f32 %v1475, %v1429
        %v1477 = vmax.f32 %v1476, %v1433
        %v1478 = vmax.f32 %v1477, %v1437
        %v1479 = vmax.f32 %v1478, %v1441
        %v1480 = vrot.slane %v1479, 4
        %v1481 = vmax.f32 %v1479, %v1480
        %v1482 = vrot.slane %v1481, 2
        %v1483 = vmax.f32 %v1481, %v1482
        %v1484 = vrot.slane %v1483, 1
        %v1485 = vmax.f32 %v1483, %v1484
        %v1486 = vmax.f32 %v1382, %v1386
        %v1487 = vmax.f32 %v1486, %v1390
        %v1488 = vmax.f32 %v1487, %v1394
        %v1489 = vmax.f32 %v1488, %v1398
        %v1490 = vmax.f32 %v1489, %v1402
        %v1491 = vmax.f32 %v1490, %v1406
        %v1492 = vmax.f32 %v1491, %v1410
        %v1493 = vmax.f32 %v1492, %v1414
        %v1494 = vmax.f32 %v1493, %v1418
        %v1495 = vmax.f32 %v1494, %v1422
        %v1496 = vmax.f32 %v1495, %v1426
        %v1497 = vmax.f32 %v1496, %v1430
        %v1498 = vmax.f32 %v1497, %v1434
        %v1499 = vmax.f32 %v1498, %v1438
        %v1500 = vmax.f32 %v1499, %v1442
        %v1501 = vrot.slane %v1500, 4
        %v1502 = vmax.f32 %v1500, %v1501
        %v1503 = vrot.slane %v1502, 2
        %v1504 = vmax.f32 %v1502, %v1503
        %v1505 = vrot.slane %v1504, 1
        %v1506 = vmax.f32 %v1504, %v1505
        %v1507 = vmax.f32 %v1383, %v1387
        %v1508 = vmax.f32 %v1507, %v1391
        %v1509 = vmax.f32 %v1508, %v1395
        %v1510 = vmax.f32 %v1509, %v1399
        %v1511 = vmax.f32 %v1510, %v1403
        %v1512 = vmax.f32 %v1511, %v1407
        %v1513 = vmax.f32 %v1512, %v1411
        %v1514 = vmax.f32 %v1513, %v1415
        %v1515 = vmax.f32 %v1514, %v1419
        %v1516 = vmax.f32 %v1515, %v1423
        %v1517 = vmax.f32 %v1516, %v1427
        %v1518 = vmax.f32 %v1517, %v1431
        %v1519 = vmax.f32 %v1518, %v1435
        %v1520 = vmax.f32 %v1519, %v1439
        %v1521 = vmax.f32 %v1520, %v1443
        %v1522 = vrot.slane %v1521, 4
        %v1523 = vmax.f32 %v1521, %v1522
        %v1524 = vrot.slane %v1523, 2
        %v1525 = vmax.f32 %v1523, %v1524
        %v1526 = vrot.slane %v1525, 1
        %v1527 = vmax.f32 %v1525, %v1526
        %p1528 = scmp.eq.s32.totalorder %s35, 0
        // Predicated region
        $region89: #{tpu_custom_call.1} parent=71 // pred_check
          %p1529 = pneg %p1528
        $region90: #{tpu_custom_call.1} parent=71 // pred_check_branch
          %1531 = sbr.rel (%p1529) target = $region92
        $region91: #{tpu_custom_call.1} parent=71 // pred_region
          %v1536 = vrot.slane %v1485, 7
          %v1537 = vrot.slane %v1506, 6
          %v1538 = vrot.slane %v1527, 5
          %vm1539 = vcmask 1040384
          %v1540 = vsel %vm1539, %v1464, %v1536
          %vm1541 = vcmask 1042434
          %v1542 = vsel %vm1541, %v1537, %v1538
          %vm1543 = vcmask 1041408
          %v1544 = vsel %vm1543, %v1540, %v1542
          %v1546 = vlaneseq
          %vm1547 = vcmp.ge.s32.totalorder %v1546, 0
          %vm1548 = vcmp.lt.s32.totalorder %v1546, 512
          %vm1549 = vmand %vm1547, %vm1548
          %1550 = vst.msk [vmem:[#allocation2] sm:$0xf] %vm1549, %v1544
        $region92: #{tpu_custom_call.1} parent=71 // pred_fallthru
          _
        %p1551 = scmp.ne.s32.totalorder %s35, 0
        // Predicated region
        $region93: #{tpu_custom_call.1} parent=71 // pred_check
          %p1552 = pneg %p1551
        $region94: #{tpu_custom_call.1} parent=71 // pred_check_branch
          %1554 = sbr.rel (%p1552) target = $region96
        $region95: #{tpu_custom_call.1} parent=71 // pred_region
          %v1555 = vld [vmem:[#allocation2] sm:$0xf]
          %v1560 = vrot.slane %v1485, 7
          %v1561 = vrot.slane %v1506, 6
          %v1562 = vrot.slane %v1527, 5
          %vm1563 = vcmask 1040384
          %v1564 = vsel %vm1563, %v1464, %v1560
          %vm1565 = vcmask 1042434
          %v1566 = vsel %vm1565, %v1561, %v1562
          %vm1567 = vcmask 1041408
          %v1568 = vsel %vm1567, %v1564, %v1566
          %v1570 = vmax.f32 %v1555, %v1568
          %v1571 = vlaneseq
          %vm1572 = vcmp.ge.s32.totalorder %v1571, 0
          %vm1573 = vcmp.lt.s32.totalorder %v1571, 512
          %vm1574 = vmand %vm1572, %vm1573
          %1575 = vst.msk [vmem:[#allocation2] sm:$0xf] %vm1574, %v1570
        $region96: #{tpu_custom_call.1} parent=71 // pred_fallthru
          _
        // Predicated region
        $region97: #{tpu_custom_call.1} parent=71 // pred_check
          %p1576 = pneg %p1528
        $region98: #{tpu_custom_call.1} parent=71 // pred_check_branch
          %1578 = sbr.rel (%p1576) target = $region100
        $region99: #{tpu_custom_call.1} parent=71 // pred_region
          %v1579 = vld [vmem:[#allocation2] sm:$0xf]
          %v1581 = vperm.slane %v1579, 0
          %v1582 = vperm.slane %v1579, 1
          %v1583 = vperm.slane %v1579, 2
          %v1584 = vperm.slane %v1579, 3
          %v1589 = vpack.c.bf16 %v1581, %v1581
          %v1590 = vpack.c.bf16 %v1582, %v1582
          %v1591 = vpack.c.bf16 %v1583, %v1583
          %v1592 = vpack.c.bf16 %v1584, %v1584
          %v1593 = vld [vmem:[#allocation8] sm:$0xff]
          %v1594 = vld [vmem:[#allocation8 + $0x8] sm:$0xff]
          %v1595 = vld [vmem:[#allocation8 + $0x10] sm:$0xff]
          %v1596 = vld [vmem:[#allocation8 + $0x18] sm:$0xff]
          %v1597 = vld [vmem:[#allocation8 + $0x20] sm:$0xff]
          %v1598 = vld [vmem:[#allocation8 + $0x28] sm:$0xff]
          %v1599 = vld [vmem:[#allocation8 + $0x30] sm:$0xff]
          %v1600 = vld [vmem:[#allocation8 + $0x38] sm:$0xff]
          %v1601 = vld [vmem:[#allocation8 + $0x40] sm:$0xff]
          %v1602 = vld [vmem:[#allocation8 + $0x48] sm:$0xff]
          %v1603 = vld [vmem:[#allocation8 + $0x50] sm:$0xff]
          %v1604 = vld [vmem:[#allocation8 + $0x58] sm:$0xff]
          %v1605 = vld [vmem:[#allocation8 + $0x60] sm:$0xff]
          %v1606 = vld [vmem:[#allocation8 + $0x68] sm:$0xff]
          %v1607 = vld [vmem:[#allocation8 + $0x70] sm:$0xff]
          %v1608 = vld [vmem:[#allocation8 + $0x78] sm:$0xff]
          %v1609 = vld [vmem:[#allocation8 + $0x80] sm:$0xff]
          %v1610 = vld [vmem:[#allocation8 + $0x88] sm:$0xff]
          %v1611 = vld [vmem:[#allocation8 + $0x90] sm:$0xff]
          %v1612 = vld [vmem:[#allocation8 + $0x98] sm:$0xff]
          %v1613 = vld [vmem:[#allocation8 + $0xa0] sm:$0xff]
          %v1614 = vld [vmem:[#allocation8 + $0xa8] sm:$0xff]
          %v1615 = vld [vmem:[#allocation8 + $0xb0] sm:$0xff]
          %v1616 = vld [vmem:[#allocation8 + $0xb8] sm:$0xff]
          %v1617 = vld [vmem:[#allocation8 + $0xc0] sm:$0xff]
          %v1618 = vld [vmem:[#allocation8 + $0xc8] sm:$0xff]
          %v1619 = vld [vmem:[#allocation8 + $0xd0] sm:$0xff]
          %v1620 = vld [vmem:[#allocation8 + $0xd8] sm:$0xff]
          %v1621 = vld [vmem:[#allocation8 + $0xe0] sm:$0xff]
          %v1622 = vld [vmem:[#allocation8 + $0xe8] sm:$0xff]
          %v1623 = vld [vmem:[#allocation8 + $0xf0] sm:$0xff]
          %v1624 = vld [vmem:[#allocation8 + $0xf8] sm:$0xff]
          %v1625 = vld [vmem:[#allocation8 + $0x100] sm:$0xff]
          %v1626 = vld [vmem:[#allocation8 + $0x108] sm:$0xff]
          %v1627 = vld [vmem:[#allocation8 + $0x110] sm:$0xff]
          %v1628 = vld [vmem:[#allocation8 + $0x118] sm:$0xff]
          %v1629 = vld [vmem:[#allocation8 + $0x120] sm:$0xff]
          %v1630 = vld [vmem:[#allocation8 + $0x128] sm:$0xff]
          %v1631 = vld [vmem:[#allocation8 + $0x130] sm:$0xff]
          %v1632 = vld [vmem:[#allocation8 + $0x138] sm:$0xff]
          %v1633 = vld [vmem:[#allocation8 + $0x140] sm:$0xff]
          %v1634 = vld [vmem:[#allocation8 + $0x148] sm:$0xff]
          %v1635 = vld [vmem:[#allocation8 + $0x150] sm:$0xff]
          %v1636 = vld [vmem:[#allocation8 + $0x158] sm:$0xff]
          %v1637 = vld [vmem:[#allocation8 + $0x160] sm:$0xff]
          %v1638 = vld [vmem:[#allocation8 + $0x168] sm:$0xff]
          %v1639 = vld [vmem:[#allocation8 + $0x170] sm:$0xff]
          %v1640 = vld [vmem:[#allocation8 + $0x178] sm:$0xff]
          %v1641 = vld [vmem:[#allocation8 + $0x180] sm:$0xff]
          %v1642 = vld [vmem:[#allocation8 + $0x188] sm:$0xff]
          %v1643 = vld [vmem:[#allocation8 + $0x190] sm:$0xff]
          %v1644 = vld [vmem:[#allocation8 + $0x198] sm:$0xff]
          %v1645 = vld [vmem:[#allocation8 + $0x1a0] sm:$0xff]
          %v1646 = vld [vmem:[#allocation8 + $0x1a8] sm:$0xff]
          %v1647 = vld [vmem:[#allocation8 + $0x1b0] sm:$0xff]
          %v1648 = vld [vmem:[#allocation8 + $0x1b8] sm:$0xff]
          %v1649 = vld [vmem:[#allocation8 + $0x1c0] sm:$0xff]
          %v1650 = vld [vmem:[#allocation8 + $0x1c8] sm:$0xff]
          %v1651 = vld [vmem:[#allocation8 + $0x1d0] sm:$0xff]
          %v1652 = vld [vmem:[#allocation8 + $0x1d8] sm:$0xff]
          %v1653 = vld [vmem:[#allocation8 + $0x1e0] sm:$0xff]
          %v1654 = vld [vmem:[#allocation8 + $0x1e8] sm:$0xff]
          %v1655 = vld [vmem:[#allocation8 + $0x1f0] sm:$0xff]
          %v1656 = vld [vmem:[#allocation8 + $0x1f8] sm:$0xff]
          %v1657 = vld [vmem:[%s8] sm:$0x3]
          %v1722 = vunpack.c.l.b16 %v1593
          %v1723 = vunpack.c.h.b16 %v1593
          %v1724 = vunpack.c.l.b16 %v1594
          %v1725 = vunpack.c.h.b16 %v1594
          %v1726 = vunpack.c.l.b16 %v1595
          %v1727 = vunpack.c.h.b16 %v1595
          %v1728 = vunpack.c.l.b16 %v1596
          %v1729 = vunpack.c.h.b16 %v1596
          %v1730 = vunpack.c.l.b16 %v1597
          %v1731 = vunpack.c.h.b16 %v1597
          %v1732 = vunpack.c.l.b16 %v1598
          %v1733 = vunpack.c.h.b16 %v1598
          %v1734 = vunpack.c.l.b16 %v1599
          %v1735 = vunpack.c.h.b16 %v1599
          %v1736 = vunpack.c.l.b16 %v1600
          %v1737 = vunpack.c.h.b16 %v1600
          %v1738 = vunpack.c.l.b16 %v1601
          %v1739 = vunpack.c.h.b16 %v1601
          %v1740 = vunpack.c.l.b16 %v1602
          %v1741 = vunpack.c.h.b16 %v1602
          %v1742 = vunpack.c.l.b16 %v1603
          %v1743 = vunpack.c.h.b16 %v1603
          %v1744 = vunpack.c.l.b16 %v1604
          %v1745 = vunpack.c.h.b16 %v1604
          %v1746 = vunpack.c.l.b16 %v1605
          %v1747 = vunpack.c.h.b16 %v1605
          %v1748 = vunpack.c.l.b16 %v1606
          %v1749 = vunpack.c.h.b16 %v1606
          %v1750 = vunpack.c.l.b16 %v1607
          %v1751 = vunpack.c.h.b16 %v1607
          %v1752 = vunpack.c.l.b16 %v1608
          %v1753 = vunpack.c.h.b16 %v1608
          %v1754 = vunpack.c.l.b16 %v1609
          %v1755 = vunpack.c.h.b16 %v1609
          %v1756 = vunpack.c.l.b16 %v1610
          %v1757 = vunpack.c.h.b16 %v1610
          %v1758 = vunpack.c.l.b16 %v1611
          %v1759 = vunpack.c.h.b16 %v1611
          %v1760 = vunpack.c.l.b16 %v1612
          %v1761 = vunpack.c.h.b16 %v1612
          %v1762 = vunpack.c.l.b16 %v1613
          %v1763 = vunpack.c.h.b16 %v1613
          %v1764 = vunpack.c.l.b16 %v1614
          %v1765 = vunpack.c.h.b16 %v1614
          %v1766 = vunpack.c.l.b16 %v1615
          %v1767 = vunpack.c.h.b16 %v1615
          %v1768 = vunpack.c.l.b16 %v1616
          %v1769 = vunpack.c.h.b16 %v1616
          %v1770 = vunpack.c.l.b16 %v1617
          %v1771 = vunpack.c.h.b16 %v1617
          %v1772 = vunpack.c.l.b16 %v1618
          %v1773 = vunpack.c.h.b16 %v1618
          %v1774 = vunpack.c.l.b16 %v1619
          %v1775 = vunpack.c.h.b16 %v1619
          %v1776 = vunpack.c.l.b16 %v1620
          %v1777 = vunpack.c.h.b16 %v1620
          %v1778 = vunpack.c.l.b16 %v1621
          %v1779 = vunpack.c.h.b16 %v1621
          %v1780 = vunpack.c.l.b16 %v1622
          %v1781 = vunpack.c.h.b16 %v1622
          %v1782 = vunpack.c.l.b16 %v1623
          %v1783 = vunpack.c.h.b16 %v1623
          %v1784 = vunpack.c.l.b16 %v1624
          %v1785 = vunpack.c.h.b16 %v1624
          %v1786 = vunpack.c.l.b16 %v1625
          %v1787 = vunpack.c.h.b16 %v1625
          %v1788 = vunpack.c.l.b16 %v1626
          %v1789 = vunpack.c.h.b16 %v1626
          %v1790 = vunpack.c.l.b16 %v1627
          %v1791 = vunpack.c.h.b16 %v1627
          %v1792 = vunpack.c.l.b16 %v1628
          %v1793 = vunpack.c.h.b16 %v1628
          %v1794 = vunpack.c.l.b16 %v1629
          %v1795 = vunpack.c.h.b16 %v1629
          %v1796 = vunpack.c.l.b16 %v1630
          %v1797 = vunpack.c.h.b16 %v1630
          %v1798 = vunpack.c.l.b16 %v1631
          %v1799 = vunpack.c.h.b16 %v1631
          %v1800 = vunpack.c.l.b16 %v1632
          %v1801 = vunpack.c.h.b16 %v1632
          %v1802 = vunpack.c.l.b16 %v1633
          %v1803 = vunpack.c.h.b16 %v1633
          %v1804 = vunpack.c.l.b16 %v1634
          %v1805 = vunpack.c.h.b16 %v1634
          %v1806 = vunpack.c.l.b16 %v1635
          %v1807 = vunpack.c.h.b16 %v1635
          %v1808 = vunpack.c.l.b16 %v1636
          %v1809 = vunpack.c.h.b16 %v1636
          %v1810 = vunpack.c.l.b16 %v1637
          %v1811 = vunpack.c.h.b16 %v1637
          %v1812 = vunpack.c.l.b16 %v1638
          %v1813 = vunpack.c.h.b16 %v1638
          %v1814 = vunpack.c.l.b16 %v1639
          %v1815 = vunpack.c.h.b16 %v1639
          %v1816 = vunpack.c.l.b16 %v1640
          %v1817 = vunpack.c.h.b16 %v1640
          %v1818 = vunpack.c.l.b16 %v1641
          %v1819 = vunpack.c.h.b16 %v1641
          %v1820 = vunpack.c.l.b16 %v1642
          %v1821 = vunpack.c.h.b16 %v1642
          %v1822 = vunpack.c.l.b16 %v1643
          %v1823 = vunpack.c.h.b16 %v1643
          %v1824 = vunpack.c.l.b16 %v1644
          %v1825 = vunpack.c.h.b16 %v1644
          %v1826 = vunpack.c.l.b16 %v1645
          %v1827 = vunpack.c.h.b16 %v1645
          %v1828 = vunpack.c.l.b16 %v1646
          %v1829 = vunpack.c.h.b16 %v1646
          %v1830 = vunpack.c.l.b16 %v1647
          %v1831 = vunpack.c.h.b16 %v1647
          %v1832 = vunpack.c.l.b16 %v1648
          %v1833 = vunpack.c.h.b16 %v1648
          %v1834 = vunpack.c.l.b16 %v1649
          %v1835 = vunpack.c.h.b16 %v1649
          %v1836 = vunpack.c.l.b16 %v1650
          %v1837 = vunpack.c.h.b16 %v1650
          %v1838 = vunpack.c.l.b16 %v1651
          %v1839 = vunpack.c.h.b16 %v1651
          %v1840 = vunpack.c.l.b16 %v1652
          %v1841 = vunpack.c.h.b16 %v1652
          %v1842 = vunpack.c.l.b16 %v1653
          %v1843 = vunpack.c.h.b16 %v1653
          %v1844 = vunpack.c.l.b16 %v1654
          %v1845 = vunpack.c.h.b16 %v1654
          %v1846 = vunpack.c.l.b16 %v1655
          %v1847 = vunpack.c.h.b16 %v1655
          %v1848 = vunpack.c.l.b16 %v1656
          %v1849 = vunpack.c.h.b16 %v1656
          %v1850 = vpack.c.b16 %v1724, %v1722
          %v1851 = vpack.c.b16 %v1725, %v1723
          %v1852 = vpack.c.b16 %v1728, %v1726
          %v1853 = vpack.c.b16 %v1729, %v1727
          %v1854 = vpack.c.b16 %v1732, %v1730
          %v1855 = vpack.c.b16 %v1733, %v1731
          %v1856 = vpack.c.b16 %v1736, %v1734
          %v1857 = vpack.c.b16 %v1737, %v1735
          %v1858 = vpack.c.b16 %v1740, %v1738
          %v1859 = vpack.c.b16 %v1741, %v1739
          %v1860 = vpack.c.b16 %v1744, %v1742
          %v1861 = vpack.c.b16 %v1745, %v1743
          %v1862 = vpack.c.b16 %v1748, %v1746
          %v1863 = vpack.c.b16 %v1749, %v1747
          %v1864 = vpack.c.b16 %v1752, %v1750
          %v1865 = vpack.c.b16 %v1753, %v1751
          %v1866 = vpack.c.b16 %v1756, %v1754
          %v1867 = vpack.c.b16 %v1757, %v1755
          %v1868 = vpack.c.b16 %v1760, %v1758
          %v1869 = vpack.c.b16 %v1761, %v1759
          %v1870 = vpack.c.b16 %v1764, %v1762
          %v1871 = vpack.c.b16 %v1765, %v1763
          %v1872 = vpack.c.b16 %v1768, %v1766
          %v1873 = vpack.c.b16 %v1769, %v1767
          %v1874 = vpack.c.b16 %v1772, %v1770
          %v1875 = vpack.c.b16 %v1773, %v1771
          %v1876 = vpack.c.b16 %v1776, %v1774
          %v1877 = vpack.c.b16 %v1777, %v1775
          %v1878 = vpack.c.b16 %v1780, %v1778
          %v1879 = vpack.c.b16 %v1781, %v1779
          %v1880 = vpack.c.b16 %v1784, %v1782
          %v1881 = vpack.c.b16 %v1785, %v1783
          %v1882 = vpack.c.b16 %v1788, %v1786
          %v1883 = vpack.c.b16 %v1789, %v1787
          %v1884 = vpack.c.b16 %v1792, %v1790
          %v1885 = vpack.c.b16 %v1793, %v1791
          %v1886 = vpack.c.b16 %v1796, %v1794
          %v1887 = vpack.c.b16 %v1797, %v1795
          %v1888 = vpack.c.b16 %v1800, %v1798
          %v1889 = vpack.c.b16 %v1801, %v1799
          %v1890 = vpack.c.b16 %v1804, %v1802
          %v1891 = vpack.c.b16 %v1805, %v1803
          %v1892 = vpack.c.b16 %v1808, %v1806
          %v1893 = vpack.c.b16 %v1809, %v1807
          %v1894 = vpack.c.b16 %v1812, %v1810
          %v1895 = vpack.c.b16 %v1813, %v1811
          %v1896 = vpack.c.b16 %v1816, %v1814
          %v1897 = vpack.c.b16 %v1817, %v1815
          %v1898 = vpack.c.b16 %v1820, %v1818
          %v1899 = vpack.c.b16 %v1821, %v1819
          %v1900 = vpack.c.b16 %v1824, %v1822
          %v1901 = vpack.c.b16 %v1825, %v1823
          %v1902 = vpack.c.b16 %v1828, %v1826
          %v1903 = vpack.c.b16 %v1829, %v1827
          %v1904 = vpack.c.b16 %v1832, %v1830
          %v1905 = vpack.c.b16 %v1833, %v1831
          %v1906 = vpack.c.b16 %v1836, %v1834
          %v1907 = vpack.c.b16 %v1837, %v1835
          %v1908 = vpack.c.b16 %v1840, %v1838
          %v1909 = vpack.c.b16 %v1841, %v1839
          %v1910 = vpack.c.b16 %v1844, %v1842
          %v1911 = vpack.c.b16 %v1845, %v1843
          %v1912 = vpack.c.b16 %v1848, %v1846
          %v1913 = vpack.c.b16 %v1849, %v1847
          %v1979 = vperm.slane %v1657, 0
          %v1980 = vperm.slane %v1657, 1
          %1983 = vmatpush.bf16.msra.mxu0 %v1864
          %1984 = vmatpush.bf16.msra.mxu0 %v1862
          %1985 = vmatpush.bf16.msra.mxu0 %v1860
          %1986 = vmatpush.bf16.msra.mxu0 %v1858
          %1987 = vmatpush.bf16.msra.mxu0 %v1856
          %1988 = vmatpush.bf16.msra.mxu0 %v1854
          %1989 = vmatpush.bf16.msra.mxu0 %v1852
          %1990 = vmatpush.bf16.msra.mxu0 %v1850
          %1991 = vmatmul.bf16.gmra.mxu0 %v1589
          %v1992 = vpop.f32.mrf.mxu0
          %v1993 = vadd.f32 %v1979, %v1992
          %v1994 = vpop.f32.mrf.mxu0
          %1995 = vdwg.mxu0
          %1996 = vmatpush.bf16.msra.mxu0 %v1880
          %1997 = vmatpush.bf16.msra.mxu0 %v1878
          %1998 = vmatpush.bf16.msra.mxu0 %v1876
          %1999 = vmatpush.bf16.msra.mxu0 %v1874
          %2000 = vmatpush.bf16.msra.mxu0 %v1872
          %2001 = vmatpush.bf16.msra.mxu0 %v1870
          %2002 = vmatpush.bf16.msra.mxu0 %v1868
          %2003 = vmatpush.bf16.msra.mxu0 %v1866
          %2004 = vmatmul.bf16.gmra.mxu0 %v1590
          %v2005 = vpop.f32.mrf.mxu0
          %v2006 = vadd.f32 %v1993, %v2005
          %v2007 = vpop.f32.mrf.mxu0
          %2008 = vdwg.mxu0
          %2009 = vmatpush.bf16.msra.mxu0 %v1896
          %2010 = vmatpush.bf16.msra.mxu0 %v1894
          %2011 = vmatpush.bf16.msra.mxu0 %v1892
          %2012 = vmatpush.bf16.msra.mxu0 %v1890
          %2013 = vmatpush.bf16.msra.mxu0 %v1888
          %2014 = vmatpush.bf16.msra.mxu0 %v1886
          %2015 = vmatpush.bf16.msra.mxu0 %v1884
          %2016 = vmatpush.bf16.msra.mxu0 %v1882
          %2017 = vmatmul.bf16.gmra.mxu0 %v1591
          %v2018 = vpop.f32.mrf.mxu0
          %v2019 = vadd.f32 %v2006, %v2018
          %v2020 = vpop.f32.mrf.mxu0
          %2021 = vdwg.mxu0
          %2022 = vmatpush.bf16.msra.mxu0 %v1912
          %2023 = vmatpush.bf16.msra.mxu0 %v1910
          %2024 = vmatpush.bf16.msra.mxu0 %v1908
          %2025 = vmatpush.bf16.msra.mxu0 %v1906
          %2026 = vmatpush.bf16.msra.mxu0 %v1904
          %2027 = vmatpush.bf16.msra.mxu0 %v1902
          %2028 = vmatpush.bf16.msra.mxu0 %v1900
          %2029 = vmatpush.bf16.msra.mxu0 %v1898
          %2030 = vmatmul.bf16.gmra.mxu0 %v1592
          %v2031 = vpop.f32.mrf.mxu0
          %v2032 = vadd.f32 %v2019, %v2031
          %v2033 = vpop.f32.mrf.mxu0
          %2034 = vdwg.mxu0
          %2035 = vmatpush.bf16.msra.mxu0 %v1865
          %2036 = vmatpush.bf16.msra.mxu0 %v1863
          %2037 = vmatpush.bf16.msra.mxu0 %v1861
          %2038 = vmatpush.bf16.msra.mxu0 %v1859
          %2039 = vmatpush.bf16.msra.mxu0 %v1857
          %2040 = vmatpush.bf16.msra.mxu0 %v1855
          %2041 = vmatpush.bf16.msra.mxu0 %v1853
          %2042 = vmatpush.bf16.msra.mxu0 %v1851
          %2043 = vmatmul.bf16.gmra.mxu0 %v1589
          %v2044 = vpop.f32.mrf.mxu0
          %v2045 = vadd.f32 %v1980, %v2044
          %v2046 = vpop.f32.mrf.mxu0
          %2047 = vdwg.mxu0
          %2048 = vmatpush.bf16.msra.mxu0 %v1881
          %2049 = vmatpush.bf16.msra.mxu0 %v1879
          %2050 = vmatpush.bf16.msra.mxu0 %v1877
          %2051 = vmatpush.bf16.msra.mxu0 %v1875
          %2052 = vmatpush.bf16.msra.mxu0 %v1873
          %2053 = vmatpush.bf16.msra.mxu0 %v1871
          %2054 = vmatpush.bf16.msra.mxu0 %v1869
          %2055 = vmatpush.bf16.msra.mxu0 %v1867
          %2056 = vmatmul.bf16.gmra.mxu0 %v1590
          %v2057 = vpop.f32.mrf.mxu0
          %v2058 = vadd.f32 %v2045, %v2057
          %v2059 = vpop.f32.mrf.mxu0
          %2060 = vdwg.mxu0
          %2061 = vmatpush.bf16.msra.mxu0 %v1897
          %2062 = vmatpush.bf16.msra.mxu0 %v1895
          %2063 = vmatpush.bf16.msra.mxu0 %v1893
          %2064 = vmatpush.bf16.msra.mxu0 %v1891
          %2065 = vmatpush.bf16.msra.mxu0 %v1889
          %2066 = vmatpush.bf16.msra.mxu0 %v1887
          %2067 = vmatpush.bf16.msra.mxu0 %v1885
          %2068 = vmatpush.bf16.msra.mxu0 %v1883
          %2069 = vmatmul.bf16.gmra.mxu0 %v1591
          %v2070 = vpop.f32.mrf.mxu0
          %v2071 = vadd.f32 %v2058, %v2070
          %v2072 = vpop.f32.mrf.mxu0
          %2073 = vdwg.mxu0
          %2074 = vmatpush.bf16.msra.mxu0 %v1913
          %2075 = vmatpush.bf16.msra.mxu0 %v1911
          %2076 = vmatpush.bf16.msra.mxu0 %v1909
          %2077 = vmatpush.bf16.msra.mxu0 %v1907
          %2078 = vmatpush.bf16.msra.mxu0 %v1905
          %2079 = vmatpush.bf16.msra.mxu0 %v1903
          %2080 = vmatpush.bf16.msra.mxu0 %v1901
          %2081 = vmatpush.bf16.msra.mxu0 %v1899
          %2082 = vmatmul.bf16.gmra.mxu0 %v1592
          %v2083 = vpop.f32.mrf.mxu0
          %v2084 = vadd.f32 %v2071, %v2083
          %v2085 = vpop.f32.mrf.mxu0
          %2086 = vdwg.mxu0
          %v2087 = vmax.f32 %v2032, 0.0
          %v2088 = vmax.f32 %v2084, 0.0
          %v2089 = vpack.c.bf16 %v2087, %v2087
          %v2090 = vpack.c.bf16 %v2088, %v2088
          %v2091 = vld [vmem:[%s9] sm:$0xf]
          %v2092 = vld [vmem:[%s9 + $0x4] sm:$0xf]
          %v2093 = vld [vmem:[%s9 + $0x8] sm:$0xf]
          %v2094 = vld [vmem:[%s9 + $0xc] sm:$0xf]
          %v2095 = vld [vmem:[%s9 + $0x10] sm:$0xf]
          %v2096 = vld [vmem:[%s9 + $0x14] sm:$0xf]
          %v2097 = vld [vmem:[%s9 + $0x18] sm:$0xf]
          %v2098 = vld [vmem:[%s9 + $0x1c] sm:$0xf]
          %v2099 = vld [vmem:[%s9 + $0x20] sm:$0xf]
          %v2100 = vld [vmem:[%s9 + $0x24] sm:$0xf]
          %v2101 = vld [vmem:[%s9 + $0x28] sm:$0xf]
          %v2102 = vld [vmem:[%s9 + $0x2c] sm:$0xf]
          %v2103 = vld [vmem:[%s9 + $0x30] sm:$0xf]
          %v2104 = vld [vmem:[%s9 + $0x34] sm:$0xf]
          %v2105 = vld [vmem:[%s9 + $0x38] sm:$0xf]
          %v2106 = vld [vmem:[%s9 + $0x3c] sm:$0xf]
          %v2107 = vld [vmem:[%s9 + $0x40] sm:$0xf]
          %v2108 = vld [vmem:[%s9 + $0x44] sm:$0xf]
          %v2109 = vld [vmem:[%s9 + $0x48] sm:$0xf]
          %v2110 = vld [vmem:[%s9 + $0x4c] sm:$0xf]
          %v2111 = vld [vmem:[%s9 + $0x50] sm:$0xf]
          %v2112 = vld [vmem:[%s9 + $0x54] sm:$0xf]
          %v2113 = vld [vmem:[%s9 + $0x58] sm:$0xf]
          %v2114 = vld [vmem:[%s9 + $0x5c] sm:$0xf]
          %v2115 = vld [vmem:[%s9 + $0x60] sm:$0xf]
          %v2116 = vld [vmem:[%s9 + $0x64] sm:$0xf]
          %v2117 = vld [vmem:[%s9 + $0x68] sm:$0xf]
          %v2118 = vld [vmem:[%s9 + $0x6c] sm:$0xf]
          %v2119 = vld [vmem:[%s9 + $0x70] sm:$0xf]
          %v2120 = vld [vmem:[%s9 + $0x74] sm:$0xf]
          %v2121 = vld [vmem:[%s9 + $0x78] sm:$0xf]
          %v2122 = vld [vmem:[%s9 + $0x7c] sm:$0xf]
          %v2123 = vld [vmem:[%s10] sm:$0x1]
          %v2156 = vunpack.c.l.b16 %v2091
          %v2157 = vunpack.c.l.b16 %v2092
          %v2158 = vunpack.c.l.b16 %v2093
          %v2159 = vunpack.c.l.b16 %v2094
          %v2160 = vunpack.c.l.b16 %v2095
          %v2161 = vunpack.c.l.b16 %v2096
          %v2162 = vunpack.c.l.b16 %v2097
          %v2163 = vunpack.c.l.b16 %v2098
          %v2164 = vunpack.c.l.b16 %v2099
          %v2165 = vunpack.c.l.b16 %v2100
          %v2166 = vunpack.c.l.b16 %v2101
          %v2167 = vunpack.c.l.b16 %v2102
          %v2168 = vunpack.c.l.b16 %v2103
          %v2169 = vunpack.c.l.b16 %v2104
          %v2170 = vunpack.c.l.b16 %v2105
          %v2171 = vunpack.c.l.b16 %v2106
          %v2172 = vunpack.c.l.b16 %v2107
          %v2173 = vunpack.c.l.b16 %v2108
          %v2174 = vunpack.c.l.b16 %v2109
          %v2175 = vunpack.c.l.b16 %v2110
          %v2176 = vunpack.c.l.b16 %v2111
          %v2177 = vunpack.c.l.b16 %v2112
          %v2178 = vunpack.c.l.b16 %v2113
          %v2179 = vunpack.c.l.b16 %v2114
          %v2180 = vunpack.c.l.b16 %v2115
          %v2181 = vunpack.c.l.b16 %v2116
          %v2182 = vunpack.c.l.b16 %v2117
          %v2183 = vunpack.c.l.b16 %v2118
          %v2184 = vunpack.c.l.b16 %v2119
          %v2185 = vunpack.c.l.b16 %v2120
          %v2186 = vunpack.c.l.b16 %v2121
          %v2187 = vunpack.c.l.b16 %v2122
          %v2188 = vpack.c.b16 %v2157, %v2156
          %v2189 = vpack.c.b16 %v2159, %v2158
          %v2190 = vpack.c.b16 %v2161, %v2160
          %v2191 = vpack.c.b16 %v2163, %v2162
          %v2192 = vpack.c.b16 %v2165, %v2164
          %v2193 = vpack.c.b16 %v2167, %v2166
          %v2194 = vpack.c.b16 %v2169, %v2168
          %v2195 = vpack.c.b16 %v2171, %v2170
          %v2196 = vpack.c.b16 %v2173, %v2172
          %v2197 = vpack.c.b16 %v2175, %v2174
          %v2198 = vpack.c.b16 %v2177, %v2176
          %v2199 = vpack.c.b16 %v2179, %v2178
          %v2200 = vpack.c.b16 %v2181, %v2180
          %v2201 = vpack.c.b16 %v2183, %v2182
          %v2202 = vpack.c.b16 %v2185, %v2184
          %v2203 = vpack.c.b16 %v2187, %v2186
          %2220 = vmatpush.bf16.msra.mxu0 %v2195
          %2221 = vmatpush.bf16.msra.mxu0 %v2194
          %2222 = vmatpush.bf16.msra.mxu0 %v2193
          %2223 = vmatpush.bf16.msra.mxu0 %v2192
          %2224 = vmatpush.bf16.msra.mxu0 %v2191
          %2225 = vmatpush.bf16.msra.mxu0 %v2190
          %2226 = vmatpush.bf16.msra.mxu0 %v2189
          %2227 = vmatpush.bf16.msra.mxu0 %v2188
          %2228 = vmatmul.bf16.gmra.mxu0 %v2089
          %v2229 = vpop.f32.mrf.mxu0
          %v2230 = vadd.f32 %v2123, %v2229
          %v2231 = vpop.f32.mrf.mxu0
          %2232 = vdwg.mxu0
          %2233 = vmatpush.bf16.msra.mxu0 %v2203
          %2234 = vmatpush.bf16.msra.mxu0 %v2202
          %2235 = vmatpush.bf16.msra.mxu0 %v2201
          %2236 = vmatpush.bf16.msra.mxu0 %v2200
          %2237 = vmatpush.bf16.msra.mxu0 %v2199
          %2238 = vmatpush.bf16.msra.mxu0 %v2198
          %2239 = vmatpush.bf16.msra.mxu0 %v2197
          %2240 = vmatpush.bf16.msra.mxu0 %v2196
          %2241 = vmatmul.bf16.gmra.mxu0 %v2090
          %v2242 = vpop.f32.mrf.mxu0
          %v2243 = vadd.f32 %v2230, %v2242
          %v2244 = vpop.f32.mrf.mxu0
          %2245 = vdwg.mxu0
          %v2246 = vmax.f32 %v2243, 0.0
          %v2247 = vpack.c.bf16 %v2246, %v2246
          %v2248 = vld [vmem:[#allocation9] sm:$0xff]
          %v2249 = vld [vmem:[#allocation9 + $0x8] sm:$0xff]
          %v2250 = vld [vmem:[#allocation9 + $0x10] sm:$0xff]
          %v2251 = vld [vmem:[#allocation9 + $0x18] sm:$0xff]
          %v2252 = vld [vmem:[#allocation9 + $0x20] sm:$0xff]
          %v2253 = vld [vmem:[#allocation9 + $0x28] sm:$0xff]
          %v2254 = vld [vmem:[#allocation9 + $0x30] sm:$0xff]
          %v2255 = vld [vmem:[#allocation9 + $0x38] sm:$0xff]
          %v2256 = vld [vmem:[#allocation9 + $0x40] sm:$0xff]
          %v2257 = vld [vmem:[#allocation9 + $0x48] sm:$0xff]
          %v2258 = vld [vmem:[#allocation9 + $0x50] sm:$0xff]
          %v2259 = vld [vmem:[#allocation9 + $0x58] sm:$0xff]
          %v2260 = vld [vmem:[#allocation9 + $0x60] sm:$0xff]
          %v2261 = vld [vmem:[#allocation9 + $0x68] sm:$0xff]
          %v2262 = vld [vmem:[#allocation9 + $0x70] sm:$0xff]
          %v2263 = vld [vmem:[#allocation9 + $0x78] sm:$0xff]
          %v2264 = vld [vmem:[%s12] sm:$0x3]
          %v2281 = vunpack.c.l.b16 %v2248
          %v2282 = vunpack.c.h.b16 %v2248
          %v2283 = vunpack.c.l.b16 %v2249
          %v2284 = vunpack.c.h.b16 %v2249
          %v2285 = vunpack.c.l.b16 %v2250
          %v2286 = vunpack.c.h.b16 %v2250
          %v2287 = vunpack.c.l.b16 %v2251
          %v2288 = vunpack.c.h.b16 %v2251
          %v2289 = vunpack.c.l.b16 %v2252
          %v2290 = vunpack.c.h.b16 %v2252
          %v2291 = vunpack.c.l.b16 %v2253
          %v2292 = vunpack.c.h.b16 %v2253
          %v2293 = vunpack.c.l.b16 %v2254
          %v2294 = vunpack.c.h.b16 %v2254
          %v2295 = vunpack.c.l.b16 %v2255
          %v2296 = vunpack.c.h.b16 %v2255
          %v2297 = vunpack.c.l.b16 %v2256
          %v2298 = vunpack.c.h.b16 %v2256
          %v2299 = vunpack.c.l.b16 %v2257
          %v2300 = vunpack.c.h.b16 %v2257
          %v2301 = vunpack.c.l.b16 %v2258
          %v2302 = vunpack.c.h.b16 %v2258
          %v2303 = vunpack.c.l.b16 %v2259
          %v2304 = vunpack.c.h.b16 %v2259
          %v2305 = vunpack.c.l.b16 %v2260
          %v2306 = vunpack.c.h.b16 %v2260
          %v2307 = vunpack.c.l.b16 %v2261
          %v2308 = vunpack.c.h.b16 %v2261
          %v2309 = vunpack.c.l.b16 %v2262
          %v2310 = vunpack.c.h.b16 %v2262
          %v2311 = vunpack.c.l.b16 %v2263
          %v2312 = vunpack.c.h.b16 %v2263
          %v2313 = vpack.c.b16 %v2283, %v2281
          %v2314 = vpack.c.b16 %v2284, %v2282
          %v2315 = vpack.c.b16 %v2287, %v2285
          %v2316 = vpack.c.b16 %v2288, %v2286
          %v2317 = vpack.c.b16 %v2291, %v2289
          %v2318 = vpack.c.b16 %v2292, %v2290
          %v2319 = vpack.c.b16 %v2295, %v2293
          %v2320 = vpack.c.b16 %v2296, %v2294
          %v2321 = vpack.c.b16 %v2299, %v2297
          %v2322 = vpack.c.b16 %v2300, %v2298
          %v2323 = vpack.c.b16 %v2303, %v2301
          %v2324 = vpack.c.b16 %v2304, %v2302
          %v2325 = vpack.c.b16 %v2307, %v2305
          %v2326 = vpack.c.b16 %v2308, %v2306
          %v2327 = vpack.c.b16 %v2311, %v2309
          %v2328 = vpack.c.b16 %v2312, %v2310
          %v2346 = vperm.slane %v2264, 0
          %v2347 = vperm.slane %v2264, 1
          %2350 = vmatpush.bf16.msra.mxu0 %v2327
          %2351 = vmatpush.bf16.msra.mxu0 %v2325
          %2352 = vmatpush.bf16.msra.mxu0 %v2323
          %2353 = vmatpush.bf16.msra.mxu0 %v2321
          %2354 = vmatpush.bf16.msra.mxu0 %v2319
          %2355 = vmatpush.bf16.msra.mxu0 %v2317
          %2356 = vmatpush.bf16.msra.mxu0 %v2315
          %2357 = vmatpush.bf16.msra.mxu0 %v2313
          %2358 = vmatmul.bf16.gmra.mxu0 %v2247
          %v2359 = vpop.f32.mrf.mxu0
          %v2360 = vadd.f32 %v2346, %v2359
          %v2361 = vpop.f32.mrf.mxu0
          %2362 = vdwg.mxu0
          %2363 = vmatpush.bf16.msra.mxu0 %v2328
          %2364 = vmatpush.bf16.msra.mxu0 %v2326
          %2365 = vmatpush.bf16.msra.mxu0 %v2324
          %2366 = vmatpush.bf16.msra.mxu0 %v2322
          %2367 = vmatpush.bf16.msra.mxu0 %v2320
          %2368 = vmatpush.bf16.msra.mxu0 %v2318
          %2369 = vmatpush.bf16.msra.mxu0 %v2316
          %2370 = vmatpush.bf16.msra.mxu0 %v2314
          %2371 = vmatmul.bf16.gmra.mxu0 %v2247
          %v2372 = vpop.f32.mrf.mxu0
          %v2373 = vadd.f32 %v2347, %v2372
          %v2374 = vpop.f32.mrf.mxu0
          %2375 = vdwg.mxu0
          %v2378 = vrot.slane %v2373, 7
          %vm2379 = vcmask 1040384
          %v2380 = vsel %vm2379, %v2360, %v2378
          %v2382 = vlaneseq
          %vm2383 = vcmp.ge.s32.totalorder %v2382, 0
          %vm2384 = vcmp.lt.s32.totalorder %v2382, 256
          %vm2385 = vmand %vm2383, %vm2384
          %2386 = vst.msk [vmem:[%s523] sm:$0x3] %vm2385, %v2380
        $region100: #{tpu_custom_call.1} parent=71 // pred_fallthru
          _
        %s2387 = sand.u32 %s330, 1
        %s2388 = scalar_lea.sflag [#allocation5], %s2387
        %s2389 = sand.u32 %s330, 1
        %s2390 = smul.addr %s2389, 2
        %s2391 = scalar_lea.vmem [#allocation11], %s2390
        // Predicated region
        $region101: #{tpu_custom_call.1} parent=71 // pred_check
          %p2392 = pneg %p340
        $region102: #{tpu_custom_call.1} parent=71 // pred_check_branch
          %2394 = sbr.rel (%p2392) target = $region104
        $region103: #{tpu_custom_call.1} parent=71 // pred_region
          %2396 = vsyncadd %s2388, 0
          %s2397 = smul.addr %s34, 2
          %s2398 = scalar_lea.hbm %s13, %s2397
          %s2400 = sshll.u32 %s2391, 4
          %s2401 = int_to_ptr.vmem [resolvable:$true] %s2400
          %s2402 = sshll.u32 %s2398, 4
          %s2403 = int_to_ptr.hbm [resolvable:$true] %s2402
          %2405 = dma.vmem_to_hbm [thread:$0]  %s2401, 32, %s2403, %s2388
        $region104: #{tpu_custom_call.1} parent=71 // pred_fallthru
          _
      $region72: #{tpu_custom_call.1} parent=5 // pred_fallthru
        _
      %p2406 = scmp.le.s32.totalorder 2, %s25
      // Predicated region
      $region105: #{tpu_custom_call.1} parent=5 // pred_check
        %p2407 = pneg %p2406
      $region106: #{tpu_custom_call.1} parent=5 // pred_check_branch
        %2409 = sbr.rel (%p2407) target = $region108
      $region107: #{tpu_custom_call.1} parent=5 // pred_region
        %s2410 = ssub.s32 %s25, 2
        // Predicated region
        $region109: #{tpu_custom_call.1} parent=107 // pred_check
          %p2411 = pneg %p346
        $region110: #{tpu_custom_call.1} parent=107 // pred_check_branch
          %2413 = sbr.rel (%p2411) target = $region112
        $region111: #{tpu_custom_call.1} parent=107 // pred_region
          %s2414 = sand.u32 %s331, 1
          %s2415 = scalar_lea.sflag [#allocation5], %s2414
          %s2416 = sand.u32 %s331, 1
          %s2417 = smul.addr %s2416, 2
          %s2418 = scalar_lea.vmem [#allocation11], %s2417
          %2420 = dma.done %s2415, 32
        $region112: #{tpu_custom_call.1} parent=107 // pred_fallthru
          _
      $region108: #{tpu_custom_call.1} parent=5 // pred_fallthru
        _
    $region6: #{tpu_custom_call.1} parent=1 // loop_footer
      %s29 = sadd.s32 1, %s25
    $region7: #{tpu_custom_call.1} parent=1 // loop_footer_branch
      %24 = sbr.rel target = $region3
    $region8: #{tpu_custom_call.1} parent=1 // loop_exit
      _
    %2421 = vsyncpa [#allocation4], 1
    %s2422 = scalar_lea.sflag [#allocation4], 1
    %2423 = vsyncpa %s2422, 1
    %2424 = vsyncpa [#allocation7], 1
    %2425 = vsyncpa [#allocation10], 1
    %2426 = vsyncpa [#allocation5], 1
    %s2427 = scalar_lea.sflag [#allocation5], 1
    %2428 = vsyncpa %s2427, 1

</llo_original>
